<compile_context>
chip_gen: v5e
topology: v5e:2x2
jax: 0.10.0
libtpu: 0.0.40
codegen_flags: <defaults>
</compile_context>

<pallas_src>
import functools

import jax
import jax.numpy as jnp
from jax.experimental import pallas as pl
from jax.experimental.pallas import tpu as pltpu


def _round_up(v, m):
    return (v + m - 1) // m * m


# ---------------------------------------------------------------------------
# Fused Pallas kernel: both separable-conv branches + final add, one image/step.
# ---------------------------------------------------------------------------
def _gcn_fused_kernel(x_ref, wl1_ref, wl2_ref, wr1_ref, wr2_ref, b_ref,
                      mh_ref, mw_ref, o_ref, tapsL_ref, tapsR_ref, *,
                      H, W, kh, kw, pad0, pad1):
    # x_ref:   (1, Cin, H*W)   channels on sublanes, flattened spatial on lanes
    # w*_ref:  (Cout, k*ceil8(C))  exactly-sized packed weights per conv
    # b_ref:   (4, Cout, 1)    biases [l1, l2, r1, r2]
    # mh_ref:  (kh, H*W)       per-tap validity mask for (kh x 1) convs
    # mw_ref:  (kw, H*W)       per-tap validity mask for (1 x kw) convs
    # o_ref:   (1, Cout, H*W)
    # taps*_ref: VMEM scratch, one per branch (removes WAR serialization)
    f32 = jnp.float32
    HW = H * W
    cdt = tapsL_ref.dtype                       # compute/staging dtype (= x dtype)

    mh = mh_ref[...]                            # (kh, HW)
    mw = mw_ref[...]                            # (kw, HW)

    def stage(taps_ref, src, k, pad, along_h, mask):
        """Stage k rolled+masked taps of src (C, HW) with full-width aligned stores."""
        c = src.shape[0]
        cs = _round_up(c, 8)                    # 8-aligned sublane stride per tap
        zero_rows = cs - c
        for t in range(k):                      # k is small & static -> unrolled
            d = t - pad                         # spatial offset of this tap
            s = d * W if along_h else d         # offset in flattened coordinates
            r0 = t * cs
            if s == 0:
                taps_ref[r0:r0 + c, :] = src
            else:
                v = pltpu.roll(src, (-s) % HW, axis=1)      # XLU lane rotation
                taps_ref[r0:r0 + c, :] = v * mask[t:t + 1, :]  # boundary zeroing
            if zero_rows:                       # keep K-padding rows finite/zero
                taps_ref[r0 + c:r0 + cs, :] = jnp.zeros((zero_rows, HW), cdt)
        return k * cs                           # exact contraction length

    def conv_matmul(taps_ref, kcs, w_ref_, b_idx):
        # One MXU contraction over all taps & channels (exact K), one bias add.
        out = jnp.dot(w_ref_[...], taps_ref[0:kcs, :], preferred_element_type=f32)
        return out + b_ref[b_idx].astype(f32)   # (Cout, HW) f32

    x = x_ref[0].astype(cdt)                    # (Cin, HW)

    # First conv of each branch: independent scratches -> staging of one branch
    # overlaps the other branch's matmul.
    kL = stage(tapsL_ref, x, kh, pad0, True, mh)            # l1: (kh x 1)
    kR = stage(tapsR_ref, x, kw, pad1, False, mw)           # r1: (1 x kw)
    xl = conv_matmul(tapsL_ref, kL, wl1_ref, 0)
    xr = conv_matmul(tapsR_ref, kR, wr1_ref, 2)

    # Second conv of each branch.
    kL = stage(tapsL_ref, xl.astype(cdt), kw, pad1, False, mw)   # l2: (1 x kw)
    kR = stage(tapsR_ref, xr.astype(cdt), kh, pad0, True, mh)    # r2: (kh x 1)
    xl = conv_matmul(tapsL_ref, kL, wl2_ref, 1)
    xr = conv_matmul(tapsR_ref, kR, wr2_ref, 3)

    # Fused final add + lane-dense store (last dim = H*W, multiple of 128).
    o_ref[0] = (xl + xr).astype(o_ref.dtype)


# ---------------------------------------------------------------------------
# Host-side weight packing + pallas_call wrapper
# ---------------------------------------------------------------------------
def _pack_weight(w_kco):
    """(K, Cin, Cout) -> (Cout, K*ceil8(Cin)); col t*cs+ci holds w[t, ci, co]."""
    K, C, Cout = w_kco.shape
    cs = _round_up(C, 8)
    a = jnp.transpose(w_kco, (2, 0, 1))                 # (Cout, K, C)
    a = jnp.pad(a, ((0, 0), (0, 0), (0, cs - C)))       # (Cout, K, cs)
    return a.reshape(Cout, K * cs)


def global_conv_module(x_nchw, params, kernel_size):
    """Forward pass of _GlobalConvModule; x is NCHW, returns NCHW."""
    N, Cin, H, W = x_nchw.shape
    kh, kw = kernel_size
    assert kh % 2 == 1 and kw % 2 == 1, "GCN uses odd kernel sizes"
    pad0 = (kh - 1) // 2
    pad1 = (kw - 1) // 2
    Cout = params["l1_b"].shape[0]
    HW = H * W
    dt = x_nchw.dtype

    cs_in = _round_up(Cin, 8)
    cs_out = _round_up(Cout, 8)

    # Exactly-sized packed weights per conv, in the compute dtype (bf16 stays bf16).
    w_l1 = _pack_weight(params["l1_w"]).astype(dt)      # (Cout, kh*cs_in)
    w_l2 = _pack_weight(params["l2_w"]).astype(dt)      # (Cout, kw*cs_out)
    w_r1 = _pack_weight(params["r1_w"]).astype(dt)      # (Cout, kw*cs_in)
    w_r2 = _pack_weight(params["r2_w"]).astype(dt)      # (Cout, kh*cs_out)
    b_stack = jnp.stack([params["l1_b"], params["l2_b"],
                         params["r1_b"], params["r2_b"]]
                        ).astype(jnp.float32)[..., None]  # (4, Cout, 1)

    # Hoisted per-tap boundary masks (1.0 = valid input position for that tap).
    row = jnp.arange(HW, dtype=jnp.int32) // W
    col = jnp.arange(HW, dtype=jnp.int32) % W
    dh = jnp.arange(kh, dtype=jnp.int32)[:, None] - pad0
    dw = jnp.arange(kw, dtype=jnp.int32)[:, None] - pad1
    mask_h = ((row[None, :] + dh >= 0) & (row[None, :] + dh < H)).astype(dt)  # (kh, HW)
    mask_w = ((col[None, :] + dw >= 0) & (col[None, :] + dw < W)).astype(dt)  # (kw, HW)

    xf = x_nchw.reshape(N, Cin, HW)   # trailing-dim merge: no HBM relayout

    # Per-branch scratch sizes (exact, not the global max over all four convs).
    bufL_rows = max(kh * cs_in, kw * cs_out)
    bufR_rows = max(kw * cs_in, kh * cs_out)

    kern = functools.partial(_gcn_fused_kernel, H=H, W=W, kh=kh, kw=kw,
                             pad0=pad0, pad1=pad1)

    out = pl.pallas_call(
        kern,
        out_shape=jax.ShapeDtypeStruct((N, Cout, HW), dt),
        grid=(N,),
        in_specs=[
            pl.BlockSpec((1, Cin, HW), lambda n: (n, 0, 0)),
            pl.BlockSpec(w_l1.shape, lambda n: (0, 0)),
            pl.BlockSpec(w_l2.shape, lambda n: (0, 0)),
            pl.BlockSpec(w_r1.shape, lambda n: (0, 0)),
            pl.BlockSpec(w_r2.shape, lambda n: (0, 0)),
            pl.BlockSpec((4, Cout, 1), lambda n: (0, 0, 0)),
            pl.BlockSpec((kh, HW), lambda n: (0, 0)),
            pl.BlockSpec((kw, HW), lambda n: (0, 0)),
        ],
        out_specs=pl.BlockSpec((1, Cout, HW), lambda n: (n, 0, 0)),
        scratch_shapes=[pltpu.VMEM((bufL_rows, HW), dt),
                        pltpu.VMEM((bufR_rows, HW), dt)],
        compiler_params=pltpu.CompilerParams(
            dimension_semantics=("parallel",)),
    )(xf, w_l1, w_l2, w_r1, w_r2, b_stack, mask_h, mask_w)

    return out.reshape(N, Cout, H, W)


# ---------------------------------------------------------------------------
# Parameter init (deterministic) + pure-JAX reference for verification
# ---------------------------------------------------------------------------
def init_params(key, in_dim, out_dim, kernel_size):
    kh, kw = kernel_size
    keys = jax.random.split(key, 8)

    def w(k, taps, cin, cout):
        return 0.1 * jax.random.normal(k, (taps, cin, cout), jnp.float32)

    def bias(k, cout):
        return 0.1 * jax.random.normal(k, (cout,), jnp.float32)

    return {
        "l1_w": w(keys[0], kh, in_dim, out_dim), "l1_b": bias(keys[1], out_dim),
        "l2_w": w(keys[2], kw, out_dim, out_dim), "l2_b": bias(keys[3], out_dim),
        "r1_w": w(keys[4], kw, in_dim, out_dim), "r1_b": bias(keys[5], out_dim),
        "r2_w": w(keys[6], kh, out_dim, out_dim), "r2_b": bias(keys[7], out_dim),
    }


def _to_oihw(w_kco, along_h):
    # (K, Cin, Cout) -> PyTorch OIHW: (Cout, Cin, kh, kw)
    w_oik = jnp.transpose(w_kco, (2, 1, 0))  # (Cout, Cin, K)
    return w_oik[:, :, :, None] if along_h else w_oik[:, :, None, :]


def _conv2d_ref(x, w_oihw, b, pad_h, pad_w):
    y = jax.lax.conv_general_dilated(
        x, w_oihw, window_strides=(1, 1),
        padding=((pad_h, pad_h), (pad_w, pad_w)),
        dimension_numbers=("NCHW", "OIHW", "NCHW"))
    return y + b[None, :, None, None]


def global_conv_module_ref(x, params, kernel_size):
    pad0 = (kernel_size[0] - 1) // 2
    pad1 = (kernel_size[1] - 1) // 2
    xl = _conv2d_ref(x, _to_oihw(params["l1_w"], True), params["l1_b"], pad0, 0)
    xl = _conv2d_ref(xl, _to_oihw(params["l2_w"], False), params["l2_b"], 0, pad1)
    xr = _conv2d_ref(x, _to_oihw(params["r1_w"], False), params["r1_b"], 0, pad1)
    xr = _conv2d_ref(xr, _to_oihw(params["r2_w"], True), params["r2_b"], pad0, 0)
    return xl + xr


# ---------------------------------------------------------------------------
if __name__ == "__main__":
    in_dim, out_dim = 4, 8
    kernel_size = (7, 7)

    key = jax.random.PRNGKey(0)
    k_x, k_p = jax.random.split(key)
    x = jax.random.normal(k_x, (2, in_dim, 16, 16), jnp.float32)  # NCHW
    params = init_params(k_p, in_dim, out_dim, kernel_size)

    out = jax.block_until_ready(global_conv_module(x, params, kernel_size))

    ref = jax.block_until_ready(global_conv_module_ref(x, params, kernel_size))
    assert out.shape == ref.shape == (2, out_dim, 16, 16)
    assert jnp.allclose(out, ref, atol=1e-4, rtol=1e-4), "mismatch vs reference"

    print("KERNEL_OK")
</pallas_src>

<mosaic_0001>
module attributes {stable_mosaic.version = 11 : i64} {
  func.func @_gcn_fused_kernel(%arg0: i32, %arg1: memref<1x4x256xf32, #tpu.memory_space<vmem>>, %arg2: memref<8x56xf32, #tpu.memory_space<vmem>>, %arg3: memref<8x56xf32, #tpu.memory_space<vmem>>, %arg4: memref<8x56xf32, #tpu.memory_space<vmem>>, %arg5: memref<8x56xf32, #tpu.memory_space<vmem>>, %arg6: memref<4x8x1xf32, #tpu.memory_space<vmem>>, %arg7: memref<7x256xf32, #tpu.memory_space<vmem>>, %arg8: memref<7x256xf32, #tpu.memory_space<vmem>>, %arg9: memref<1x8x256xf32, #tpu.memory_space<vmem>>, %arg10: memref<56x256xf32, #tpu.memory_space<vmem>>, %arg11: memref<56x256xf32, #tpu.memory_space<vmem>>) attributes {dimension_semantics = [#tpu.dimension_semantics<parallel>], iteration_bounds = array<i64: 2>, scalar_prefetch = 0 : i64, scratch_operands = 2 : i64, tpu.core_type = #tpu.core_type<tc>, window_params = [{transform_indices = @transform_0, window_bounds = array<i64: 1, 4, 256>}, {pipeline_mode = #tpu.pipeline_mode<synchronous>, transform_indices = @transform_1, window_bounds = array<i64: 8, 56>}, {pipeline_mode = #tpu.pipeline_mode<synchronous>, transform_indices = @transform_2, window_bounds = array<i64: 8, 56>}, {pipeline_mode = #tpu.pipeline_mode<synchronous>, transform_indices = @transform_3, window_bounds = array<i64: 8, 56>}, {pipeline_mode = #tpu.pipeline_mode<synchronous>, transform_indices = @transform_4, window_bounds = array<i64: 8, 56>}, {pipeline_mode = #tpu.pipeline_mode<synchronous>, transform_indices = @transform_5, window_bounds = array<i64: 4, 8, 1>}, {pipeline_mode = #tpu.pipeline_mode<synchronous>, transform_indices = @transform_6, window_bounds = array<i64: 7, 256>}, {pipeline_mode = #tpu.pipeline_mode<synchronous>, transform_indices = @transform_7, window_bounds = array<i64: 7, 256>}, {transform_indices = @transform_8, window_bounds = array<i64: 1, 8, 256>}]} {
    %c0 = arith.constant 0 : index
    %c0_0 = arith.constant 0 : index
    %0 = vector.load %arg7[%c0, %c0_0] : memref<7x256xf32, #tpu.memory_space<vmem>>, vector<7x256xf32>
    %c0_1 = arith.constant 0 : index
    %c0_2 = arith.constant 0 : index
    %1 = vector.load %arg8[%c0_1, %c0_2] : memref<7x256xf32, #tpu.memory_space<vmem>>, vector<7x256xf32>
    %c0_3 = arith.constant 0 : index
    %c0_4 = arith.constant 0 : index
    %c0_5 = arith.constant 0 : index
    %2 = vector.load %arg1[%c0_3, %c0_4, %c0_5] : memref<1x4x256xf32, #tpu.memory_space<vmem>>, vector<1x4x256xf32>
    %3 = vector.shape_cast %2 : vector<1x4x256xf32> to vector<4x256xf32>
    %c48_i32 = arith.constant 48 : i32
    %4 = tpu.dynamic_rotate %3 by %c48_i32 dim 1 : vector<4x256xf32>, i32 -> vector<4x256xf32>
    %5 = vector.extract_strided_slice %0 {offsets = [0, 0], sizes = [1, 256], strides = [1, 1]} : vector<7x256xf32> to vector<1x256xf32>
    %6 = vector.broadcast %5 : vector<1x256xf32> to vector<4x256xf32>
    %7 = arith.mulf %4, %6 : vector<4x256xf32>
    %c0_6 = arith.constant 0 : index
    %c0_7 = arith.constant 0 : index
    %8 = vector.load %arg10[%c0_6, %c0_7] : memref<56x256xf32, #tpu.memory_space<vmem>>, vector<4x256xf32>
    tpu.vector_store %arg10[%c0_6, %c0_7], %7 {strides = array<i32>} : memref<56x256xf32, #tpu.memory_space<vmem>>, vector<4x256xf32>,
    %cst = arith.constant 0.000000e+00 : f32
    %9 = vector.broadcast %cst : f32 to vector<4x256xf32>
    %c4 = arith.constant 4 : index
    %c0_8 = arith.constant 0 : index
    %10 = vector.load %arg10[%c4, %c0_8] : memref<56x256xf32, #tpu.memory_space<vmem>>, vector<4x256xf32>
    tpu.vector_store %arg10[%c4, %c0_8], %9 {strides = array<i32>} : memref<56x256xf32, #tpu.memory_space<vmem>>, vector<4x256xf32>,
    %c32_i32 = arith.constant 32 : i32
    %11 = tpu.dynamic_rotate %3 by %c32_i32 dim 1 : vector<4x256xf32>, i32 -> vector<4x256xf32>
    %12 = vector.extract_strided_slice %0 {offsets = [1, 0], sizes = [1, 256], strides = [1, 1]} : vector<7x256xf32> to vector<1x256xf32>
    %13 = vector.broadcast %12 : vector<1x256xf32> to vector<4x256xf32>
    %14 = arith.mulf %11, %13 : vector<4x256xf32>
    %c8 = arith.constant 8 : index
    %c0_9 = arith.constant 0 : index
    %15 = vector.load %arg10[%c8, %c0_9] : memref<56x256xf32, #tpu.memory_space<vmem>>, vector<4x256xf32>
    tpu.vector_store %arg10[%c8, %c0_9], %14 {strides = array<i32>} : memref<56x256xf32, #tpu.memory_space<vmem>>, vector<4x256xf32>,
    %cst_10 = arith.constant 0.000000e+00 : f32
    %16 = vector.broadcast %cst_10 : f32 to vector<4x256xf32>
    %c12 = arith.constant 12 : index
    %c0_11 = arith.constant 0 : index
    %17 = vector.load %arg10[%c12, %c0_11] : memref<56x256xf32, #tpu.memory_space<vmem>>, vector<4x256xf32>
    tpu.vector_store %arg10[%c12, %c0_11], %16 {strides = array<i32>} : memref<56x256xf32, #tpu.memory_space<vmem>>, vector<4x256xf32>,
    %c16_i32 = arith.constant 16 : i32
    %18 = tpu.dynamic_rotate %3 by %c16_i32 dim 1 : vector<4x256xf32>, i32 -> vector<4x256xf32>
    %19 = vector.extract_strided_slice %0 {offsets = [2, 0], sizes = [1, 256], strides = [1, 1]} : vector<7x256xf32> to vector<1x256xf32>
    %20 = vector.broadcast %19 : vector<1x256xf32> to vector<4x256xf32>
    %21 = arith.mulf %18, %20 : vector<4x256xf32>
    %c16 = arith.constant 16 : index
    %c0_12 = arith.constant 0 : index
    %22 = vector.load %arg10[%c16, %c0_12] : memref<56x256xf32, #tpu.memory_space<vmem>>, vector<4x256xf32>
    tpu.vector_store %arg10[%c16, %c0_12], %21 {strides = array<i32>} : memref<56x256xf32, #tpu.memory_space<vmem>>, vector<4x256xf32>,
    %cst_13 = arith.constant 0.000000e+00 : f32
    %23 = vector.broadcast %cst_13 : f32 to vector<4x256xf32>
    %c20 = arith.constant 20 : index
    %c0_14 = arith.constant 0 : index
    %24 = vector.load %arg10[%c20, %c0_14] : memref<56x256xf32, #tpu.memory_space<vmem>>, vector<4x256xf32>
    tpu.vector_store %arg10[%c20, %c0_14], %23 {strides = array<i32>} : memref<56x256xf32, #tpu.memory_space<vmem>>, vector<4x256xf32>,
    %c24 = arith.constant 24 : index
    %c0_15 = arith.constant 0 : index
    %25 = vector.load %arg10[%c24, %c0_15] : memref<56x256xf32, #tpu.memory_space<vmem>>, vector<4x256xf32>
    tpu.vector_store %arg10[%c24, %c0_15], %3 {strides = array<i32>} : memref<56x256xf32, #tpu.memory_space<vmem>>, vector<4x256xf32>,
    %cst_16 = arith.constant 0.000000e+00 : f32
    %26 = vector.broadcast %cst_16 : f32 to vector<4x256xf32>
    %c28 = arith.constant 28 : index
    %c0_17 = arith.constant 0 : index
    %27 = vector.load %arg10[%c28, %c0_17] : memref<56x256xf32, #tpu.memory_space<vmem>>, vector<4x256xf32>
    tpu.vector_store %arg10[%c28, %c0_17], %26 {strides = array<i32>} : memref<56x256xf32, #tpu.memory_space<vmem>>, vector<4x256xf32>,
    %c240_i32 = arith.constant 240 : i32
    %28 = tpu.dynamic_rotate %3 by %c240_i32 dim 1 : vector<4x256xf32>, i32 -> vector<4x256xf32>
    %29 = vector.extract_strided_slice %0 {offsets = [4, 0], sizes = [1, 256], strides = [1, 1]} : vector<7x256xf32> to vector<1x256xf32>
    %30 = vector.broadcast %29 : vector<1x256xf32> to vector<4x256xf32>
    %31 = arith.mulf %28, %30 : vector<4x256xf32>
    %c32 = arith.constant 32 : index
    %c0_18 = arith.constant 0 : index
    %32 = vector.load %arg10[%c32, %c0_18] : memref<56x256xf32, #tpu.memory_space<vmem>>, vector<4x256xf32>
    tpu.vector_store %arg10[%c32, %c0_18], %31 {strides = array<i32>} : memref<56x256xf32, #tpu.memory_space<vmem>>, vector<4x256xf32>,
    %cst_19 = arith.constant 0.000000e+00 : f32
    %33 = vector.broadcast %cst_19 : f32 to vector<4x256xf32>
    %c36 = arith.constant 36 : index
    %c0_20 = arith.constant 0 : index
    %34 = vector.load %arg10[%c36, %c0_20] : memref<56x256xf32, #tpu.memory_space<vmem>>, vector<4x256xf32>
    tpu.vector_store %arg10[%c36, %c0_20], %33 {strides = array<i32>} : memref<56x256xf32, #tpu.memory_space<vmem>>, vector<4x256xf32>,
    %c224_i32 = arith.constant 224 : i32
    %35 = tpu.dynamic_rotate %3 by %c224_i32 dim 1 : vector<4x256xf32>, i32 -> vector<4x256xf32>
    %36 = vector.extract_strided_slice %0 {offsets = [5, 0], sizes = [1, 256], strides = [1, 1]} : vector<7x256xf32> to vector<1x256xf32>
    %37 = vector.broadcast %36 : vector<1x256xf32> to vector<4x256xf32>
    %38 = arith.mulf %35, %37 : vector<4x256xf32>
    %c40 = arith.constant 40 : index
    %c0_21 = arith.constant 0 : index
    %39 = vector.load %arg10[%c40, %c0_21] : memref<56x256xf32, #tpu.memory_space<vmem>>, vector<4x256xf32>
    tpu.vector_store %arg10[%c40, %c0_21], %38 {strides = array<i32>} : memref<56x256xf32, #tpu.memory_space<vmem>>, vector<4x256xf32>,
    %cst_22 = arith.constant 0.000000e+00 : f32
    %40 = vector.broadcast %cst_22 : f32 to vector<4x256xf32>
    %c44 = arith.constant 44 : index
    %c0_23 = arith.constant 0 : index
    %41 = vector.load %arg10[%c44, %c0_23] : memref<56x256xf32, #tpu.memory_space<vmem>>, vector<4x256xf32>
    tpu.vector_store %arg10[%c44, %c0_23], %40 {strides = array<i32>} : memref<56x256xf32, #tpu.memory_space<vmem>>, vector<4x256xf32>,
    %c208_i32 = arith.constant 208 : i32
    %42 = tpu.dynamic_rotate %3 by %c208_i32 dim 1 : vector<4x256xf32>, i32 -> vector<4x256xf32>
    %43 = vector.extract_strided_slice %0 {offsets = [6, 0], sizes = [1, 256], strides = [1, 1]} : vector<7x256xf32> to vector<1x256xf32>
    %44 = vector.broadcast %43 : vector<1x256xf32> to vector<4x256xf32>
    %45 = arith.mulf %42, %44 : vector<4x256xf32>
    %c48 = arith.constant 48 : index
    %c0_24 = arith.constant 0 : index
    %46 = vector.load %arg10[%c48, %c0_24] : memref<56x256xf32, #tpu.memory_space<vmem>>, vector<4x256xf32>
    tpu.vector_store %arg10[%c48, %c0_24], %45 {strides = array<i32>} : memref<56x256xf32, #tpu.memory_space<vmem>>, vector<4x256xf32>,
    %cst_25 = arith.constant 0.000000e+00 : f32
    %47 = vector.broadcast %cst_25 : f32 to vector<4x256xf32>
    %c52 = arith.constant 52 : index
    %c0_26 = arith.constant 0 : index
    %48 = vector.load %arg10[%c52, %c0_26] : memref<56x256xf32, #tpu.memory_space<vmem>>, vector<4x256xf32>
    tpu.vector_store %arg10[%c52, %c0_26], %47 {strides = array<i32>} : memref<56x256xf32, #tpu.memory_space<vmem>>, vector<4x256xf32>,
    %c3_i32 = arith.constant 3 : i32
    %49 = tpu.dynamic_rotate %3 by %c3_i32 dim 1 : vector<4x256xf32>, i32 -> vector<4x256xf32>
    %50 = vector.extract_strided_slice %1 {offsets = [0, 0], sizes = [1, 256], strides = [1, 1]} : vector<7x256xf32> to vector<1x256xf32>
    %51 = vector.broadcast %50 : vector<1x256xf32> to vector<4x256xf32>
    %52 = arith.mulf %49, %51 : vector<4x256xf32>
    %c0_27 = arith.constant 0 : index
    %c0_28 = arith.constant 0 : index
    %53 = vector.load %arg11[%c0_27, %c0_28] : memref<56x256xf32, #tpu.memory_space<vmem>>, vector<4x256xf32>
    tpu.vector_store %arg11[%c0_27, %c0_28], %52 {strides = array<i32>} : memref<56x256xf32, #tpu.memory_space<vmem>>, vector<4x256xf32>,
    %cst_29 = arith.constant 0.000000e+00 : f32
    %54 = vector.broadcast %cst_29 : f32 to vector<4x256xf32>
    %c4_30 = arith.constant 4 : index
    %c0_31 = arith.constant 0 : index
    %55 = vector.load %arg11[%c4_30, %c0_31] : memref<56x256xf32, #tpu.memory_space<vmem>>, vector<4x256xf32>
    tpu.vector_store %arg11[%c4_30, %c0_31], %54 {strides = array<i32>} : memref<56x256xf32, #tpu.memory_space<vmem>>, vector<4x256xf32>,
    %c2_i32 = arith.constant 2 : i32
    %56 = tpu.dynamic_rotate %3 by %c2_i32 dim 1 : vector<4x256xf32>, i32 -> vector<4x256xf32>
    %57 = vector.extract_strided_slice %1 {offsets = [1, 0], sizes = [1, 256], strides = [1, 1]} : vector<7x256xf32> to vector<1x256xf32>
    %58 = vector.broadcast %57 : vector<1x256xf32> to vector<4x256xf32>
    %59 = arith.mulf %56, %58 : vector<4x256xf32>
    %c8_32 = arith.constant 8 : index
    %c0_33 = arith.constant 0 : index
    %60 = vector.load %arg11[%c8_32, %c0_33] : memref<56x256xf32, #tpu.memory_space<vmem>>, vector<4x256xf32>
    tpu.vector_store %arg11[%c8_32, %c0_33], %59 {strides = array<i32>} : memref<56x256xf32, #tpu.memory_space<vmem>>, vector<4x256xf32>,
    %cst_34 = arith.constant 0.000000e+00 : f32
    %61 = vector.broadcast %cst_34 : f32 to vector<4x256xf32>
    %c12_35 = arith.constant 12 : index
    %c0_36 = arith.constant 0 : index
    %62 = vector.load %arg11[%c12_35, %c0_36] : memref<56x256xf32, #tpu.memory_space<vmem>>, vector<4x256xf32>
    tpu.vector_store %arg11[%c12_35, %c0_36], %61 {strides = array<i32>} : memref<56x256xf32, #tpu.memory_space<vmem>>, vector<4x256xf32>,
    %c1_i32 = arith.constant 1 : i32
    %63 = tpu.dynamic_rotate %3 by %c1_i32 dim 1 : vector<4x256xf32>, i32 -> vector<4x256xf32>
    %64 = vector.extract_strided_slice %1 {offsets = [2, 0], sizes = [1, 256], strides = [1, 1]} : vector<7x256xf32> to vector<1x256xf32>
    %65 = vector.broadcast %64 : vector<1x256xf32> to vector<4x256xf32>
    %66 = arith.mulf %63, %65 : vector<4x256xf32>
    %c16_37 = arith.constant 16 : index
    %c0_38 = arith.constant 0 : index
    %67 = vector.load %arg11[%c16_37, %c0_38] : memref<56x256xf32, #tpu.memory_space<vmem>>, vector<4x256xf32>
    tpu.vector_store %arg11[%c16_37, %c0_38], %66 {strides = array<i32>} : memref<56x256xf32, #tpu.memory_space<vmem>>, vector<4x256xf32>,
    %cst_39 = arith.constant 0.000000e+00 : f32
    %68 = vector.broadcast %cst_39 : f32 to vector<4x256xf32>
    %c20_40 = arith.constant 20 : index
    %c0_41 = arith.constant 0 : index
    %69 = vector.load %arg11[%c20_40, %c0_41] : memref<56x256xf32, #tpu.memory_space<vmem>>, vector<4x256xf32>
    tpu.vector_store %arg11[%c20_40, %c0_41], %68 {strides = array<i32>} : memref<56x256xf32, #tpu.memory_space<vmem>>, vector<4x256xf32>,
    %c24_42 = arith.constant 24 : index
    %c0_43 = arith.constant 0 : index
    %70 = vector.load %arg11[%c24_42, %c0_43] : memref<56x256xf32, #tpu.memory_space<vmem>>, vector<4x256xf32>
    tpu.vector_store %arg11[%c24_42, %c0_43], %3 {strides = array<i32>} : memref<56x256xf32, #tpu.memory_space<vmem>>, vector<4x256xf32>,
    %cst_44 = arith.constant 0.000000e+00 : f32
    %71 = vector.broadcast %cst_44 : f32 to vector<4x256xf32>
    %c28_45 = arith.constant 28 : index
    %c0_46 = arith.constant 0 : index
    %72 = vector.load %arg11[%c28_45, %c0_46] : memref<56x256xf32, #tpu.memory_space<vmem>>, vector<4x256xf32>
    tpu.vector_store %arg11[%c28_45, %c0_46], %71 {strides = array<i32>} : memref<56x256xf32, #tpu.memory_space<vmem>>, vector<4x256xf32>,
    %c255_i32 = arith.constant 255 : i32
    %73 = tpu.dynamic_rotate %3 by %c255_i32 dim 1 : vector<4x256xf32>, i32 -> vector<4x256xf32>
    %74 = vector.extract_strided_slice %1 {offsets = [4, 0], sizes = [1, 256], strides = [1, 1]} : vector<7x256xf32> to vector<1x256xf32>
    %75 = vector.broadcast %74 : vector<1x256xf32> to vector<4x256xf32>
    %76 = arith.mulf %73, %75 : vector<4x256xf32>
    %c32_47 = arith.constant 32 : index
    %c0_48 = arith.constant 0 : index
    %77 = vector.load %arg11[%c32_47, %c0_48] : memref<56x256xf32, #tpu.memory_space<vmem>>, vector<4x256xf32>
    tpu.vector_store %arg11[%c32_47, %c0_48], %76 {strides = array<i32>} : memref<56x256xf32, #tpu.memory_space<vmem>>, vector<4x256xf32>,
    %cst_49 = arith.constant 0.000000e+00 : f32
    %78 = vector.broadcast %cst_49 : f32 to vector<4x256xf32>
    %c36_50 = arith.constant 36 : index
    %c0_51 = arith.constant 0 : index
    %79 = vector.load %arg11[%c36_50, %c0_51] : memref<56x256xf32, #tpu.memory_space<vmem>>, vector<4x256xf32>
    tpu.vector_store %arg11[%c36_50, %c0_51], %78 {strides = array<i32>} : memref<56x256xf32, #tpu.memory_space<vmem>>, vector<4x256xf32>,
    %c254_i32 = arith.constant 254 : i32
    %80 = tpu.dynamic_rotate %3 by %c254_i32 dim 1 : vector<4x256xf32>, i32 -> vector<4x256xf32>
    %81 = vector.extract_strided_slice %1 {offsets = [5, 0], sizes = [1, 256], strides = [1, 1]} : vector<7x256xf32> to vector<1x256xf32>
    %82 = vector.broadcast %81 : vector<1x256xf32> to vector<4x256xf32>
    %83 = arith.mulf %80, %82 : vector<4x256xf32>
    %c40_52 = arith.constant 40 : index
    %c0_53 = arith.constant 0 : index
    %84 = vector.load %arg11[%c40_52, %c0_53] : memref<56x256xf32, #tpu.memory_space<vmem>>, vector<4x256xf32>
    tpu.vector_store %arg11[%c40_52, %c0_53], %83 {strides = array<i32>} : memref<56x256xf32, #tpu.memory_space<vmem>>, vector<4x256xf32>,
    %cst_54 = arith.constant 0.000000e+00 : f32
    %85 = vector.broadcast %cst_54 : f32 to vector<4x256xf32>
    %c44_55 = arith.constant 44 : index
    %c0_56 = arith.constant 0 : index
    %86 = vector.load %arg11[%c44_55, %c0_56] : memref<56x256xf32, #tpu.memory_space<vmem>>, vector<4x256xf32>
    tpu.vector_store %arg11[%c44_55, %c0_56], %85 {strides = array<i32>} : memref<56x256xf32, #tpu.memory_space<vmem>>, vector<4x256xf32>,
    %c253_i32 = arith.constant 253 : i32
    %87 = tpu.dynamic_rotate %3 by %c253_i32 dim 1 : vector<4x256xf32>, i32 -> vector<4x256xf32>
    %88 = vector.extract_strided_slice %1 {offsets = [6, 0], sizes = [1, 256], strides = [1, 1]} : vector<7x256xf32> to vector<1x256xf32>
    %89 = vector.broadcast %88 : vector<1x256xf32> to vector<4x256xf32>
    %90 = arith.mulf %87, %89 : vector<4x256xf32>
    %c48_57 = arith.constant 48 : index
    %c0_58 = arith.constant 0 : index
    %91 = vector.load %arg11[%c48_57, %c0_58] : memref<56x256xf32, #tpu.memory_space<vmem>>, vector<4x256xf32>
    tpu.vector_store %arg11[%c48_57, %c0_58], %90 {strides = array<i32>} : memref<56x256xf32, #tpu.memory_space<vmem>>, vector<4x256xf32>,
    %cst_59 = arith.constant 0.000000e+00 : f32
    %92 = vector.broadcast %cst_59 : f32 to vector<4x256xf32>
    %c52_60 = arith.constant 52 : index
    %c0_61 = arith.constant 0 : index
    %93 = vector.load %arg11[%c52_60, %c0_61] : memref<56x256xf32, #tpu.memory_space<vmem>>, vector<4x256xf32>
    tpu.vector_store %arg11[%c52_60, %c0_61], %92 {strides = array<i32>} : memref<56x256xf32, #tpu.memory_space<vmem>>, vector<4x256xf32>,
    %c0_62 = arith.constant 0 : index
    %c0_63 = arith.constant 0 : index
    %94 = vector.load %arg2[%c0_62, %c0_63] : memref<8x56xf32, #tpu.memory_space<vmem>>, vector<8x56xf32>
    %c0_64 = arith.constant 0 : index
    %c0_65 = arith.constant 0 : index
    %95 = vector.load %arg10[%c0_64, %c0_65] : memref<56x256xf32, #tpu.memory_space<vmem>>, vector<56x256xf32>
    %cst_66 = arith.constant dense<0.000000e+00> : vector<8x256xf32>
    %96 = tpu.matmul %94, %95, %cst_66 {dimension_numbers = #tpu.dot_dimension_numbers<[1], [0], [0], [1], [0, 0, 1, 1], [], []>} : vector<8x56xf32>, vector<56x256xf32>, vector<8x256xf32> -> vector<8x256xf32>
    %c0_67 = arith.constant 0 : index
    %c0_68 = arith.constant 0 : index
    %c0_69 = arith.constant 0 : index
    %97 = vector.load %arg6[%c0_67, %c0_68, %c0_69] : memref<4x8x1xf32, #tpu.memory_space<vmem>>, vector<1x8x1xf32>
    %98 = vector.shape_cast %97 : vector<1x8x1xf32> to vector<8x1xf32>
    %99 = vector.broadcast %98 : vector<8x1xf32> to vector<8x256xf32>
    %100 = arith.addf %96, %99 : vector<8x256xf32>
    %c0_70 = arith.constant 0 : index
    %c0_71 = arith.constant 0 : index
    %101 = vector.load %arg4[%c0_70, %c0_71] : memref<8x56xf32, #tpu.memory_space<vmem>>, vector<8x56xf32>
    %c0_72 = arith.constant 0 : index
    %c0_73 = arith.constant 0 : index
    %102 = vector.load %arg11[%c0_72, %c0_73] : memref<56x256xf32, #tpu.memory_space<vmem>>, vector<56x256xf32>
    %cst_74 = arith.constant dense<0.000000e+00> : vector<8x256xf32>
    %103 = tpu.matmul %101, %102, %cst_74 {dimension_numbers = #tpu.dot_dimension_numbers<[1], [0], [0], [1], [0, 0, 1, 1], [], []>} : vector<8x56xf32>, vector<56x256xf32>, vector<8x256xf32> -> vector<8x256xf32>
    %c2 = arith.constant 2 : index
    %c0_75 = arith.constant 0 : index
    %c0_76 = arith.constant 0 : index
    %104 = vector.load %arg6[%c2, %c0_75, %c0_76] : memref<4x8x1xf32, #tpu.memory_space<vmem>>, vector<1x8x1xf32>
    %105 = vector.shape_cast %104 : vector<1x8x1xf32> to vector<8x1xf32>
    %106 = vector.broadcast %105 : vector<8x1xf32> to vector<8x256xf32>
    %107 = arith.addf %103, %106 : vector<8x256xf32>
    %c3_i32_77 = arith.constant 3 : i32
    %108 = tpu.dynamic_rotate %100 by %c3_i32_77 dim 1 : vector<8x256xf32>, i32 -> vector<8x256xf32>
    %109 = vector.extract_strided_slice %1 {offsets = [0, 0], sizes = [1, 256], strides = [1, 1]} : vector<7x256xf32> to vector<1x256xf32>
    %110 = vector.broadcast %109 : vector<1x256xf32> to vector<8x256xf32>
    %111 = arith.mulf %108, %110 : vector<8x256xf32>
    %c0_78 = arith.constant 0 : index
    %c0_79 = arith.constant 0 : index
    %112 = vector.load %arg10[%c0_78, %c0_79] : memref<56x256xf32, #tpu.memory_space<vmem>>, vector<8x256xf32>
    tpu.vector_store %arg10[%c0_78, %c0_79], %111 {strides = array<i32>} : memref<56x256xf32, #tpu.memory_space<vmem>>, vector<8x256xf32>,
    %c2_i32_80 = arith.constant 2 : i32
    %113 = tpu.dynamic_rotate %100 by %c2_i32_80 dim 1 : vector<8x256xf32>, i32 -> vector<8x256xf32>
    %114 = vector.extract_strided_slice %1 {offsets = [1, 0], sizes = [1, 256], strides = [1, 1]} : vector<7x256xf32> to vector<1x256xf32>
    %115 = vector.broadcast %114 : vector<1x256xf32> to vector<8x256xf32>
    %116 = arith.mulf %113, %115 : vector<8x256xf32>
    %c8_81 = arith.constant 8 : index
    %c0_82 = arith.constant 0 : index
    %117 = vector.load %arg10[%c8_81, %c0_82] : memref<56x256xf32, #tpu.memory_space<vmem>>, vector<8x256xf32>
    tpu.vector_store %arg10[%c8_81, %c0_82], %116 {strides = array<i32>} : memref<56x256xf32, #tpu.memory_space<vmem>>, vector<8x256xf32>,
    %c1_i32_83 = arith.constant 1 : i32
    %118 = tpu.dynamic_rotate %100 by %c1_i32_83 dim 1 : vector<8x256xf32>, i32 -> vector<8x256xf32>
    %119 = vector.extract_strided_slice %1 {offsets = [2, 0], sizes = [1, 256], strides = [1, 1]} : vector<7x256xf32> to vector<1x256xf32>
    %120 = vector.broadcast %119 : vector<1x256xf32> to vector<8x256xf32>
    %121 = arith.mulf %118, %120 : vector<8x256xf32>
    %c16_84 = arith.constant 16 : index
    %c0_85 = arith.constant 0 : index
    %122 = vector.load %arg10[%c16_84, %c0_85] : memref<56x256xf32, #tpu.memory_space<vmem>>, vector<8x256xf32>
    tpu.vector_store %arg10[%c16_84, %c0_85], %121 {strides = array<i32>} : memref<56x256xf32, #tpu.memory_space<vmem>>, vector<8x256xf32>,
    %c24_86 = arith.constant 24 : index
    %c0_87 = arith.constant 0 : index
    %123 = vector.load %arg10[%c24_86, %c0_87] : memref<56x256xf32, #tpu.memory_space<vmem>>, vector<8x256xf32>
    tpu.vector_store %arg10[%c24_86, %c0_87], %100 {strides = array<i32>} : memref<56x256xf32, #tpu.memory_space<vmem>>, vector<8x256xf32>,
    %c255_i32_88 = arith.constant 255 : i32
    %124 = tpu.dynamic_rotate %100 by %c255_i32_88 dim 1 : vector<8x256xf32>, i32 -> vector<8x256xf32>
    %125 = vector.extract_strided_slice %1 {offsets = [4, 0], sizes = [1, 256], strides = [1, 1]} : vector<7x256xf32> to vector<1x256xf32>
    %126 = vector.broadcast %125 : vector<1x256xf32> to vector<8x256xf32>
    %127 = arith.mulf %124, %126 : vector<8x256xf32>
    %c32_89 = arith.constant 32 : index
    %c0_90 = arith.constant 0 : index
    %128 = vector.load %arg10[%c32_89, %c0_90] : memref<56x256xf32, #tpu.memory_space<vmem>>, vector<8x256xf32>
    tpu.vector_store %arg10[%c32_89, %c0_90], %127 {strides = array<i32>} : memref<56x256xf32, #tpu.memory_space<vmem>>, vector<8x256xf32>,
    %c254_i32_91 = arith.constant 254 : i32
    %129 = tpu.dynamic_rotate %100 by %c254_i32_91 dim 1 : vector<8x256xf32>, i32 -> vector<8x256xf32>
    %130 = vector.extract_strided_slice %1 {offsets = [5, 0], sizes = [1, 256], strides = [1, 1]} : vector<7x256xf32> to vector<1x256xf32>
    %131 = vector.broadcast %130 : vector<1x256xf32> to vector<8x256xf32>
    %132 = arith.mulf %129, %131 : vector<8x256xf32>
    %c40_92 = arith.constant 40 : index
    %c0_93 = arith.constant 0 : index
    %133 = vector.load %arg10[%c40_92, %c0_93] : memref<56x256xf32, #tpu.memory_space<vmem>>, vector<8x256xf32>
    tpu.vector_store %arg10[%c40_92, %c0_93], %132 {strides = array<i32>} : memref<56x256xf32, #tpu.memory_space<vmem>>, vector<8x256xf32>,
    %c253_i32_94 = arith.constant 253 : i32
    %134 = tpu.dynamic_rotate %100 by %c253_i32_94 dim 1 : vector<8x256xf32>, i32 -> vector<8x256xf32>
    %135 = vector.extract_strided_slice %1 {offsets = [6, 0], sizes = [1, 256], strides = [1, 1]} : vector<7x256xf32> to vector<1x256xf32>
    %136 = vector.broadcast %135 : vector<1x256xf32> to vector<8x256xf32>
    %137 = arith.mulf %134, %136 : vector<8x256xf32>
    %c48_95 = arith.constant 48 : index
    %c0_96 = arith.constant 0 : index
    %138 = vector.load %arg10[%c48_95, %c0_96] : memref<56x256xf32, #tpu.memory_space<vmem>>, vector<8x256xf32>
    tpu.vector_store %arg10[%c48_95, %c0_96], %137 {strides = array<i32>} : memref<56x256xf32, #tpu.memory_space<vmem>>, vector<8x256xf32>,
    %c48_i32_97 = arith.constant 48 : i32
    %139 = tpu.dynamic_rotate %107 by %c48_i32_97 dim 1 : vector<8x256xf32>, i32 -> vector<8x256xf32>
    %140 = vector.extract_strided_slice %0 {offsets = [0, 0], sizes = [1, 256], strides = [1, 1]} : vector<7x256xf32> to vector<1x256xf32>
    %141 = vector.broadcast %140 : vector<1x256xf32> to vector<8x256xf32>
    %142 = arith.mulf %139, %141 : vector<8x256xf32>
    %c0_98 = arith.constant 0 : index
    %c0_99 = arith.constant 0 : index
    %143 = vector.load %arg11[%c0_98, %c0_99] : memref<56x256xf32, #tpu.memory_space<vmem>>, vector<8x256xf32>
    tpu.vector_store %arg11[%c0_98, %c0_99], %142 {strides = array<i32>} : memref<56x256xf32, #tpu.memory_space<vmem>>, vector<8x256xf32>,
    %c32_i32_100 = arith.constant 32 : i32
    %144 = tpu.dynamic_rotate %107 by %c32_i32_100 dim 1 : vector<8x256xf32>, i32 -> vector<8x256xf32>
    %145 = vector.extract_strided_slice %0 {offsets = [1, 0], sizes = [1, 256], strides = [1, 1]} : vector<7x256xf32> to vector<1x256xf32>
    %146 = vector.broadcast %145 : vector<1x256xf32> to vector<8x256xf32>
    %147 = arith.mulf %144, %146 : vector<8x256xf32>
    %c8_101 = arith.constant 8 : index
    %c0_102 = arith.constant 0 : index
    %148 = vector.load %arg11[%c8_101, %c0_102] : memref<56x256xf32, #tpu.memory_space<vmem>>, vector<8x256xf32>
    tpu.vector_store %arg11[%c8_101, %c0_102], %147 {strides = array<i32>} : memref<56x256xf32, #tpu.memory_space<vmem>>, vector<8x256xf32>,
    %c16_i32_103 = arith.constant 16 : i32
    %149 = tpu.dynamic_rotate %107 by %c16_i32_103 dim 1 : vector<8x256xf32>, i32 -> vector<8x256xf32>
    %150 = vector.extract_strided_slice %0 {offsets = [2, 0], sizes = [1, 256], strides = [1, 1]} : vector<7x256xf32> to vector<1x256xf32>
    %151 = vector.broadcast %150 : vector<1x256xf32> to vector<8x256xf32>
    %152 = arith.mulf %149, %151 : vector<8x256xf32>
    %c16_104 = arith.constant 16 : index
    %c0_105 = arith.constant 0 : index
    %153 = vector.load %arg11[%c16_104, %c0_105] : memref<56x256xf32, #tpu.memory_space<vmem>>, vector<8x256xf32>
    tpu.vector_store %arg11[%c16_104, %c0_105], %152 {strides = array<i32>} : memref<56x256xf32, #tpu.memory_space<vmem>>, vector<8x256xf32>,
    %c24_106 = arith.constant 24 : index
    %c0_107 = arith.constant 0 : index
    %154 = vector.load %arg11[%c24_106, %c0_107] : memref<56x256xf32, #tpu.memory_space<vmem>>, vector<8x256xf32>
    tpu.vector_store %arg11[%c24_106, %c0_107], %107 {strides = array<i32>} : memref<56x256xf32, #tpu.memory_space<vmem>>, vector<8x256xf32>,
    %c240_i32_108 = arith.constant 240 : i32
    %155 = tpu.dynamic_rotate %107 by %c240_i32_108 dim 1 : vector<8x256xf32>, i32 -> vector<8x256xf32>
    %156 = vector.extract_strided_slice %0 {offsets = [4, 0], sizes = [1, 256], strides = [1, 1]} : vector<7x256xf32> to vector<1x256xf32>
    %157 = vector.broadcast %156 : vector<1x256xf32> to vector<8x256xf32>
    %158 = arith.mulf %155, %157 : vector<8x256xf32>
    %c32_109 = arith.constant 32 : index
    %c0_110 = arith.constant 0 : index
    %159 = vector.load %arg11[%c32_109, %c0_110] : memref<56x256xf32, #tpu.memory_space<vmem>>, vector<8x256xf32>
    tpu.vector_store %arg11[%c32_109, %c0_110], %158 {strides = array<i32>} : memref<56x256xf32, #tpu.memory_space<vmem>>, vector<8x256xf32>,
    %c224_i32_111 = arith.constant 224 : i32
    %160 = tpu.dynamic_rotate %107 by %c224_i32_111 dim 1 : vector<8x256xf32>, i32 -> vector<8x256xf32>
    %161 = vector.extract_strided_slice %0 {offsets = [5, 0], sizes = [1, 256], strides = [1, 1]} : vector<7x256xf32> to vector<1x256xf32>
    %162 = vector.broadcast %161 : vector<1x256xf32> to vector<8x256xf32>
    %163 = arith.mulf %160, %162 : vector<8x256xf32>
    %c40_112 = arith.constant 40 : index
    %c0_113 = arith.constant 0 : index
    %164 = vector.load %arg11[%c40_112, %c0_113] : memref<56x256xf32, #tpu.memory_space<vmem>>, vector<8x256xf32>
    tpu.vector_store %arg11[%c40_112, %c0_113], %163 {strides = array<i32>} : memref<56x256xf32, #tpu.memory_space<vmem>>, vector<8x256xf32>,
    %c208_i32_114 = arith.constant 208 : i32
    %165 = tpu.dynamic_rotate %107 by %c208_i32_114 dim 1 : vector<8x256xf32>, i32 -> vector<8x256xf32>
    %166 = vector.extract_strided_slice %0 {offsets = [6, 0], sizes = [1, 256], strides = [1, 1]} : vector<7x256xf32> to vector<1x256xf32>
    %167 = vector.broadcast %166 : vector<1x256xf32> to vector<8x256xf32>
    %168 = arith.mulf %165, %167 : vector<8x256xf32>
    %c48_115 = arith.constant 48 : index
    %c0_116 = arith.constant 0 : index
    %169 = vector.load %arg11[%c48_115, %c0_116] : memref<56x256xf32, #tpu.memory_space<vmem>>, vector<8x256xf32>
    tpu.vector_store %arg11[%c48_115, %c0_116], %168 {strides = array<i32>} : memref<56x256xf32, #tpu.memory_space<vmem>>, vector<8x256xf32>,
    %c0_117 = arith.constant 0 : index
    %c0_118 = arith.constant 0 : index
    %170 = vector.load %arg3[%c0_117, %c0_118] : memref<8x56xf32, #tpu.memory_space<vmem>>, vector<8x56xf32>
    %c0_119 = arith.constant 0 : index
    %c0_120 = arith.constant 0 : index
    %171 = vector.load %arg10[%c0_119, %c0_120] : memref<56x256xf32, #tpu.memory_space<vmem>>, vector<56x256xf32>
    %cst_121 = arith.constant dense<0.000000e+00> : vector<8x256xf32>
    %172 = tpu.matmul %170, %171, %cst_121 {dimension_numbers = #tpu.dot_dimension_numbers<[1], [0], [0], [1], [0, 0, 1, 1], [], []>} : vector<8x56xf32>, vector<56x256xf32>, vector<8x256xf32> -> vector<8x256xf32>
    %c1 = arith.constant 1 : index
    %c0_122 = arith.constant 0 : index
    %c0_123 = arith.constant 0 : index
    %173 = vector.load %arg6[%c1, %c0_122, %c0_123] : memref<4x8x1xf32, #tpu.memory_space<vmem>>, vector<1x8x1xf32>
    %174 = vector.shape_cast %173 : vector<1x8x1xf32> to vector<8x1xf32>
    %175 = vector.broadcast %174 : vector<8x1xf32> to vector<8x256xf32>
    %176 = arith.addf %172, %175 : vector<8x256xf32>
    %c0_124 = arith.constant 0 : index
    %c0_125 = arith.constant 0 : index
    %177 = vector.load %arg5[%c0_124, %c0_125] : memref<8x56xf32, #tpu.memory_space<vmem>>, vector<8x56xf32>
    %c0_126 = arith.constant 0 : index
    %c0_127 = arith.constant 0 : index
    %178 = vector.load %arg11[%c0_126, %c0_127] : memref<56x256xf32, #tpu.memory_space<vmem>>, vector<56x256xf32>
    %cst_128 = arith.constant dense<0.000000e+00> : vector<8x256xf32>
    %179 = tpu.matmul %177, %178, %cst_128 {dimension_numbers = #tpu.dot_dimension_numbers<[1], [0], [0], [1], [0, 0, 1, 1], [], []>} : vector<8x56xf32>, vector<56x256xf32>, vector<8x256xf32> -> vector<8x256xf32>
    %c3 = arith.constant 3 : index
    %c0_129 = arith.constant 0 : index
    %c0_130 = arith.constant 0 : index
    %180 = vector.load %arg6[%c3, %c0_129, %c0_130] : memref<4x8x1xf32, #tpu.memory_space<vmem>>, vector<1x8x1xf32>
    %181 = vector.shape_cast %180 : vector<1x8x1xf32> to vector<8x1xf32>
    %182 = vector.broadcast %181 : vector<8x1xf32> to vector<8x256xf32>
    %183 = arith.addf %179, %182 : vector<8x256xf32>
    %184 = arith.addf %176, %183 : vector<8x256xf32>
    %c0_131 = arith.constant 0 : index
    %c0_132 = arith.constant 0 : index
    %c0_133 = arith.constant 0 : index
    %185 = vector.load %arg9[%c0_131, %c0_132, %c0_133] : memref<1x8x256xf32, #tpu.memory_space<vmem>>, vector<1x8x256xf32>
    %186 = vector.shape_cast %185 : vector<1x8x256xf32> to vector<8x256xf32>
    %187 = vector.shape_cast %184 : vector<8x256xf32> to vector<1x8x256xf32>
    tpu.vector_store %arg9[%c0_131, %c0_132, %c0_133], %187 {strides = array<i32>} : memref<1x8x256xf32, #tpu.memory_space<vmem>>, vector<1x8x256xf32>,
    return
  }
  func.func @transform_0(%arg0: i32) -> (i32, i32, i32) {
    %c0_i32 = arith.constant 0 : i32
    %c0_i32_0 = arith.constant 0 : i32
    %c0_i32_1 = arith.constant 0 : i32
    return %arg0, %c0_i32, %c0_i32_0 : i32, i32, i32
  }
  func.func @transform_1(%arg0: i32) -> (i32, i32) {
    %c0_i32 = arith.constant 0 : i32
    %c0_i32_0 = arith.constant 0 : i32
    %c0_i32_1 = arith.constant 0 : i32
    return %c0_i32, %c0_i32_0 : i32, i32
  }
  func.func @transform_2(%arg0: i32) -> (i32, i32) {
    %c0_i32 = arith.constant 0 : i32
    %c0_i32_0 = arith.constant 0 : i32
    %c0_i32_1 = arith.constant 0 : i32
    return %c0_i32, %c0_i32_0 : i32, i32
  }
  func.func @transform_3(%arg0: i32) -> (i32, i32) {
    %c0_i32 = arith.constant 0 : i32
    %c0_i32_0 = arith.constant 0 : i32
    %c0_i32_1 = arith.constant 0 : i32
    return %c0_i32, %c0_i32_0 : i32, i32
  }
  func.func @transform_4(%arg0: i32) -> (i32, i32) {
    %c0_i32 = arith.constant 0 : i32
    %c0_i32_0 = arith.constant 0 : i32
    %c0_i32_1 = arith.constant 0 : i32
    return %c0_i32, %c0_i32_0 : i32, i32
  }
  func.func @transform_5(%arg0: i32) -> (i32, i32, i32) {
    %c0_i32 = arith.constant 0 : i32
    %c0_i32_0 = arith.constant 0 : i32
    %c0_i32_1 = arith.constant 0 : i32
    %c0_i32_2 = arith.constant 0 : i32
    return %c0_i32, %c0_i32_0, %c0_i32_1 : i32, i32, i32
  }
  func.func @transform_6(%arg0: i32) -> (i32, i32) {
    %c0_i32 = arith.constant 0 : i32
    %c0_i32_0 = arith.constant 0 : i32
    %c0_i32_1 = arith.constant 0 : i32
    return %c0_i32, %c0_i32_0 : i32, i32
  }
  func.func @transform_7(%arg0: i32) -> (i32, i32) {
    %c0_i32 = arith.constant 0 : i32
    %c0_i32_0 = arith.constant 0 : i32
    %c0_i32_1 = arith.constant 0 : i32
    return %c0_i32, %c0_i32_0 : i32, i32
  }
  func.func @transform_8(%arg0: i32) -> (i32, i32, i32) {
    %c0_i32 = arith.constant 0 : i32
    %c0_i32_0 = arith.constant 0 : i32
    %c0_i32_1 = arith.constant 0 : i32
    return %arg0, %c0_i32, %c0_i32_0 : i32, i32, i32
  }
}

</mosaic_0001>

<llo_original>
// kernel: tpu_custom_call.1
$region0: #{tpu_custom_call.1}
  #allocation0 [shape = 'u32[]', space=smem, size = 0x4, offset = 0x4, fixed_abs, tag = 'smem constant byte address 0x4 - core index']
  #allocation1 [shape = 'u32[72,128]{1,0:T(1,128)}', space=vmem, size = 0x9000, scoped, tag = 'internal scratch']
  #allocation2 [shape = 'f32[56,256]{1,0:T(8,128)}', space=vmem, size = 0xe000, scoped, tag = 'scratch operand']
  #allocation3 [shape = 'f32[56,256]{1,0:T(8,128)}', space=vmem, size = 0xe000, scoped, tag = 'scratch operand']
  %s0 = inlined_call_operand.vmem [shape: f32[2,4,256], index: 0, kind: input, shape index: {}]
  %s1 = inlined_call_operand.hbm [shape: f32[8,56], index: 1, kind: input, shape index: {}]
  %s2 = inlined_call_operand.hbm [shape: f32[8,56], index: 2, kind: input, shape index: {}]
  %s3 = inlined_call_operand.hbm [shape: f32[8,56], index: 3, kind: input, shape index: {}]
  %s4 = inlined_call_operand.hbm [shape: f32[8,56], index: 4, kind: input, shape index: {}]
  %s5 = inlined_call_operand.vmem [shape: f32[4,8,1], index: 5, kind: input, shape index: {}]
  %s6 = inlined_call_operand.vmem [shape: f32[7,256], index: 6, kind: input, shape index: {}]
  %s7 = inlined_call_operand.hbm [shape: f32[7,256], index: 7, kind: input, shape index: {}]
  %s8 = inlined_call_operand.hbm [shape: f32[2,8,256], index: 8, kind: output, shape index: {}]
  %s9 = sld [smem:[#allocation0]]
  $region85: #{tpu_custom_call.1} parent=0
    _
  %s11 = ssub.s32 1, %s9
  %s12 = scalar_select 0, %s11, %s9
  $region1: #{tpu_custom_call.1} parent=0
    #allocation4 [shape = 'u8[4096]{0}', space=vmem, size = 0x1000, scoped, tag = 'input window, operand 1, single buffered']
    #allocation5 [shape = 's32[2]{0}', space=sflag, size = 0x8, scoped, tag = 'scoped memory for tpu_custom_call.1']
    #allocation6 [shape = 's32[2]{0}', space=sflag, size = 0x8, scoped, tag = 'scoped memory for tpu_custom_call.1']
    #allocation7 [shape = 'u8[4096]{0}', space=vmem, size = 0x1000, scoped, tag = 'input window, operand 2, single buffered']
    #allocation8 [shape = 's32[1]{0}', space=sflag, size = 0x4, scoped, tag = 'scoped memory for tpu_custom_call.1']
    #allocation9 [shape = 'u8[4096]{0}', space=vmem, size = 0x1000, scoped, tag = 'input window, operand 3, single buffered']
    #allocation10 [shape = 'u8[4096]{0}', space=vmem, size = 0x1000, scoped, tag = 'input window, operand 4, single buffered']
    #allocation11 [shape = 's32[1]{0}', space=sflag, size = 0x4, scoped, tag = 'scoped memory for tpu_custom_call.1']
    #allocation12 [shape = 'u8[8192]{0}', space=vmem, size = 0x2000, scoped, tag = 'input window, operand 7, single buffered']
    #allocation13 [shape = 'u8[16384]{0}', space=vmem, size = 0x4000, scoped, tag = 'output window, operand 0']
    %13 = vsyncpa [#allocation5], 0
    %14 = vsyncpa [#allocation8], 0
    %15 = vsyncpa [#allocation11], 0
    %16 = vsyncpa [#allocation6], 0
    %s17 = scalar_lea.sflag [#allocation6], 1
    %18 = vsyncpa %s17, 0
    loop: start=0, step=1, limit=4
    $region2: #{tpu_custom_call.1} parent=1 // loop_pre_header
      _
    $region3: #{tpu_custom_call.1} parent=1 // loop_header
      %s20 = sphi 0, %s24
      %p21 = scmp.ge.s32.totalorder %s20, 4
      %s30 = sphi 0, %s32
      %s33 = sphi 0, %s30
      %s34 = sphi 0, %s33
      %s50 = sphi 0, %s34
      %s54 = sphi 0, %s54
      %s56 = sphi 0, %s54
      %s57 = sphi 0, %s56
      %s71 = sphi 0, %s57
      %s75 = sphi 0, %s75
      %s77 = sphi 0, %s75
      %s78 = sphi 0, %s77
      %s92 = sphi 0, %s78
      %s96 = sphi 0, %s96
      %s98 = sphi 0, %s96
      %s99 = sphi 0, %s98
      %s113 = sphi 0, %s99
      %s117 = sphi 0, %s117
      %s119 = sphi 0, %s117
      %s120 = sphi 0, %s119
      %s134 = sphi 0, %s120
      %s138 = sphi 0, %s138
      %s140 = sphi 0, %s138
      %s141 = sphi 0, %s140
      %s155 = sphi 0, %s141
      %s159 = sphi 0, %s159
      %s161 = sphi 0, %s159
      %s162 = sphi 0, %s161
      %s176 = sphi 0, %s162
      %s180 = sphi 0, %s180
      %s182 = sphi 0, %s180
      %s183 = sphi 0, %s182
      %s197 = sphi 0, %s183
      %s203 = sphi 0, %s205
      %s206 = sphi 0, %s203
      %s207 = sphi 0, %s206
      %s223 = sphi 0, %s207
    $region4: #{tpu_custom_call.1} parent=1 // loop_header_branch
      %23 = sbr.rel (%p21) target = $region8
    $region5: #{tpu_custom_call.1} parent=1 // loop_body
      %s25 = ssub.s32 %s20, 1
      %s26 = ssub.s32 %s20, 2
      %s27 = sadd.s32 %s20, 1
      %s28 = ssub.s32 %s20, %s27
      %p29 = scmp.eq.s32.totalorder %s28, 0
      %s31 = sadd.s32 %s30, 1
      %s32 = scalar_select %p29, %s30, %s31
      %p35 = pneg %p29
      %p36 = scmp.eq.s32.totalorder %s20, 1
      %p37 = por %p35, %p36
      %p38 = scmp.ne.s32.totalorder %s30, %s33
      %p39 = scmp.eq.s32.totalorder %s20, 0
      %p40 = por %p38, %p39
      %p41 = scmp.ne.s32.totalorder %s30, %s33
      %p42 = scmp.eq.s32.totalorder %s25, 1
      %p43 = por %p41, %p42
      %p44 = scmp.ne.s32.totalorder %s33, %s34
      %p45 = scmp.eq.s32.totalorder %s25, 0
      %p46 = por %p44, %p45
      %p47 = scmp.ne.s32.totalorder %s33, %s34
      %p48 = scmp.eq.s32.totalorder %s26, 1
      %p49 = por %p47, %p48
      %p51 = scmp.ne.s32.totalorder %s34, %s50
      %p52 = scmp.eq.s32.totalorder %s26, 0
      %p53 = por %p51, %p52
      %s55 = sadd.s32 %s54, 1
      %p58 = scmp.eq.s32.totalorder %s20, 1
      %p59 = scmp.ne.s32.totalorder %s54, %s56
      %p60 = scmp.eq.s32.totalorder %s20, 0
      %p61 = por %p59, %p60
      %p62 = scmp.ne.s32.totalorder %s54, %s56
      %p63 = scmp.eq.s32.totalorder %s25, 1
      %p64 = por %p62, %p63
      %p65 = scmp.ne.s32.totalorder %s56, %s57
      %p66 = scmp.eq.s32.totalorder %s25, 0
      %p67 = por %p65, %p66
      %p68 = scmp.ne.s32.totalorder %s56, %s57
      %p69 = scmp.eq.s32.totalorder %s26, 1
      %p70 = por %p68, %p69
      %p72 = scmp.ne.s32.totalorder %s57, %s71
      %p73 = scmp.eq.s32.totalorder %s26, 0
      %p74 = por %p72, %p73
      %s76 = sadd.s32 %s75, 1
      %p79 = scmp.eq.s32.totalorder %s20, 1
      %p80 = scmp.ne.s32.totalorder %s75, %s77
      %p81 = scmp.eq.s32.totalorder %s20, 0
      %p82 = por %p80, %p81
      %p83 = scmp.ne.s32.totalorder %s75, %s77
      %p84 = scmp.eq.s32.totalorder %s25, 1
      %p85 = por %p83, %p84
      %p86 = scmp.ne.s32.totalorder %s77, %s78
      %p87 = scmp.eq.s32.totalorder %s25, 0
      %p88 = por %p86, %p87
      %p89 = scmp.ne.s32.totalorder %s77, %s78
      %p90 = scmp.eq.s32.totalorder %s26, 1
      %p91 = por %p89, %p90
      %p93 = scmp.ne.s32.totalorder %s78, %s92
      %p94 = scmp.eq.s32.totalorder %s26, 0
      %p95 = por %p93, %p94
      %s97 = sadd.s32 %s96, 1
      %p100 = scmp.eq.s32.totalorder %s20, 1
      %p101 = scmp.ne.s32.totalorder %s96, %s98
      %p102 = scmp.eq.s32.totalorder %s20, 0
      %p103 = por %p101, %p102
      %p104 = scmp.ne.s32.totalorder %s96, %s98
      %p105 = scmp.eq.s32.totalorder %s25, 1
      %p106 = por %p104, %p105
      %p107 = scmp.ne.s32.totalorder %s98, %s99
      %p108 = scmp.eq.s32.totalorder %s25, 0
      %p109 = por %p107, %p108
      %p110 = scmp.ne.s32.totalorder %s98, %s99
      %p111 = scmp.eq.s32.totalorder %s26, 1
      %p112 = por %p110, %p111
      %p114 = scmp.ne.s32.totalorder %s99, %s113
      %p115 = scmp.eq.s32.totalorder %s26, 0
      %p116 = por %p114, %p115
      %s118 = sadd.s32 %s117, 1
      %p121 = scmp.eq.s32.totalorder %s20, 1
      %p122 = scmp.ne.s32.totalorder %s117, %s119
      %p123 = scmp.eq.s32.totalorder %s20, 0
      %p124 = por %p122, %p123
      %p125 = scmp.ne.s32.totalorder %s117, %s119
      %p126 = scmp.eq.s32.totalorder %s25, 1
      %p127 = por %p125, %p126
      %p128 = scmp.ne.s32.totalorder %s119, %s120
      %p129 = scmp.eq.s32.totalorder %s25, 0
      %p130 = por %p128, %p129
      %p131 = scmp.ne.s32.totalorder %s119, %s120
      %p132 = scmp.eq.s32.totalorder %s26, 1
      %p133 = por %p131, %p132
      %p135 = scmp.ne.s32.totalorder %s120, %s134
      %p136 = scmp.eq.s32.totalorder %s26, 0
      %p137 = por %p135, %p136
      %s139 = sadd.s32 %s138, 1
      %p142 = scmp.eq.s32.totalorder %s20, 1
      %p143 = scmp.ne.s32.totalorder %s138, %s140
      %p144 = scmp.eq.s32.totalorder %s20, 0
      %p145 = por %p143, %p144
      %p146 = scmp.ne.s32.totalorder %s138, %s140
      %p147 = scmp.eq.s32.totalorder %s25, 1
      %p148 = por %p146, %p147
      %p149 = scmp.ne.s32.totalorder %s140, %s141
      %p150 = scmp.eq.s32.totalorder %s25, 0
      %p151 = por %p149, %p150
      %p152 = scmp.ne.s32.totalorder %s140, %s141
      %p153 = scmp.eq.s32.totalorder %s26, 1
      %p154 = por %p152, %p153
      %p156 = scmp.ne.s32.totalorder %s141, %s155
      %p157 = scmp.eq.s32.totalorder %s26, 0
      %p158 = por %p156, %p157
      %s160 = sadd.s32 %s159, 1
      %p163 = scmp.eq.s32.totalorder %s20, 1
      %p164 = scmp.ne.s32.totalorder %s159, %s161
      %p165 = scmp.eq.s32.totalorder %s20, 0
      %p166 = por %p164, %p165
      %p167 = scmp.ne.s32.totalorder %s159, %s161
      %p168 = scmp.eq.s32.totalorder %s25, 1
      %p169 = por %p167, %p168
      %p170 = scmp.ne.s32.totalorder %s161, %s162
      %p171 = scmp.eq.s32.totalorder %s25, 0
      %p172 = por %p170, %p171
      %p173 = scmp.ne.s32.totalorder %s161, %s162
      %p174 = scmp.eq.s32.totalorder %s26, 1
      %p175 = por %p173, %p174
      %p177 = scmp.ne.s32.totalorder %s162, %s176
      %p178 = scmp.eq.s32.totalorder %s26, 0
      %p179 = por %p177, %p178
      %s181 = sadd.s32 %s180, 1
      %p184 = scmp.eq.s32.totalorder %s20, 1
      %p185 = scmp.ne.s32.totalorder %s180, %s182
      %p186 = scmp.eq.s32.totalorder %s20, 0
      %p187 = por %p185, %p186
      %p188 = scmp.ne.s32.totalorder %s180, %s182
      %p189 = scmp.eq.s32.totalorder %s25, 1
      %p190 = por %p188, %p189
      %p191 = scmp.ne.s32.totalorder %s182, %s183
      %p192 = scmp.eq.s32.totalorder %s25, 0
      %p193 = por %p191, %p192
      %p194 = scmp.ne.s32.totalorder %s182, %s183
      %p195 = scmp.eq.s32.totalorder %s26, 1
      %p196 = por %p194, %p195
      %p198 = scmp.ne.s32.totalorder %s183, %s197
      %p199 = scmp.eq.s32.totalorder %s26, 0
      %p200 = por %p198, %p199
      %s201 = ssub.s32 %s20, %s27
      %p202 = scmp.eq.s32.totalorder %s201, 0
      %s204 = sadd.s32 %s203, 1
      %s205 = scalar_select %p202, %s203, %s204
      %p208 = pneg %p202
      %p209 = scmp.eq.s32.totalorder %s20, 1
      %p210 = por %p208, %p209
      %p211 = scmp.ne.s32.totalorder %s203, %s206
      %p212 = scmp.eq.s32.totalorder %s20, 0
      %p213 = por %p211, %p212
      %p214 = scmp.ne.s32.totalorder %s203, %s206
      %p215 = scmp.eq.s32.totalorder %s25, 1
      %p216 = por %p214, %p215
      %p217 = scmp.ne.s32.totalorder %s206, %s207
      %p218 = scmp.eq.s32.totalorder %s25, 0
      %p219 = por %p217, %p218
      %p220 = scmp.ne.s32.totalorder %s206, %s207
      %p221 = scmp.eq.s32.totalorder %s26, 1
      %p222 = por %p220, %p221
      %p224 = scmp.ne.s32.totalorder %s207, %s223
      %p225 = scmp.eq.s32.totalorder %s26, 0
      %p226 = por %p224, %p225
      %p227 = scmp.le.s32.totalorder 1, %s20
      %p228 = scmp.lt.s32.totalorder %s20, 3
      %p229 = pnand %p227, %p228
      %p230 = pneg %p229
      // Predicated region
      $region9: #{tpu_custom_call.1} parent=5 // pred_check
        _
      $region10: #{tpu_custom_call.1} parent=5 // pred_check_branch
        %232 = sbr.rel (%p229) target = $region12
      $region11: #{tpu_custom_call.1} parent=5 // pred_region
        %s233 = ssub.s32 %s20, 1
        // Predicated region
        $region13: #{tpu_custom_call.1} parent=11 // pred_check
          %p234 = pneg %p67
        $region14: #{tpu_custom_call.1} parent=11 // pred_check_branch
          %236 = sbr.rel (%p234) target = $region16
        $region15: #{tpu_custom_call.1} parent=11 // pred_region
          %238 = vsyncadd [#allocation5], 0
          %s240 = sshll.u32 %s1, 4
          %s241 = int_to_ptr.hbm [resolvable:$true] %s240
          %s242 = sshll.u32 [#allocation4], 4
          %s243 = int_to_ptr.vmem [resolvable:$true] %s242
          %245 = dma.hbm_to_vmem [thread:$0]  %s241, 128, %s243, [#allocation5]
        $region16: #{tpu_custom_call.1} parent=11 // pred_fallthru
          _
        // Predicated region
        $region17: #{tpu_custom_call.1} parent=11 // pred_check
          %p246 = pneg %p88
        $region18: #{tpu_custom_call.1} parent=11 // pred_check_branch
          %248 = sbr.rel (%p246) target = $region20
        $region19: #{tpu_custom_call.1} parent=11 // pred_region
          %250 = vsyncadd [#allocation8], 0
          %s252 = sshll.u32 %s2, 4
          %s253 = int_to_ptr.hbm [resolvable:$true] %s252
          %s254 = sshll.u32 [#allocation7], 4
          %s255 = int_to_ptr.vmem [resolvable:$true] %s254
          %257 = dma.hbm_to_vmem [thread:$0]  %s253, 128, %s255, [#allocation8]
        $region20: #{tpu_custom_call.1} parent=11 // pred_fallthru
          _
        // Predicated region
        $region21: #{tpu_custom_call.1} parent=11 // pred_check
          %p258 = pneg %p109
        $region22: #{tpu_custom_call.1} parent=11 // pred_check_branch
          %260 = sbr.rel (%p258) target = $region24
        $region23: #{tpu_custom_call.1} parent=11 // pred_region
          %262 = vsyncadd [#allocation8], 0
          %s264 = sshll.u32 %s3, 4
          %s265 = int_to_ptr.hbm [resolvable:$true] %s264
          %s266 = sshll.u32 [#allocation9], 4
          %s267 = int_to_ptr.vmem [resolvable:$true] %s266
          %269 = dma.hbm_to_vmem [thread:$0]  %s265, 128, %s267, [#allocation8]
        $region24: #{tpu_custom_call.1} parent=11 // pred_fallthru
          _
        // Predicated region
        $region25: #{tpu_custom_call.1} parent=11 // pred_check
          %p270 = pneg %p130
        $region26: #{tpu_custom_call.1} parent=11 // pred_check_branch
          %272 = sbr.rel (%p270) target = $region28
        $region27: #{tpu_custom_call.1} parent=11 // pred_region
          %274 = vsyncadd [#allocation11], 0
          %s276 = sshll.u32 %s4, 4
          %s277 = int_to_ptr.hbm [resolvable:$true] %s276
          %s278 = sshll.u32 [#allocation10], 4
          %s279 = int_to_ptr.vmem [resolvable:$true] %s278
          %281 = dma.hbm_to_vmem [thread:$0]  %s277, 128, %s279, [#allocation11]
        $region28: #{tpu_custom_call.1} parent=11 // pred_fallthru
          _
        // Predicated region
        $region29: #{tpu_custom_call.1} parent=11 // pred_check
          %p282 = pneg %p151
        $region30: #{tpu_custom_call.1} parent=11 // pred_check_branch
          %284 = sbr.rel (%p282) target = $region32
        $region31: #{tpu_custom_call.1} parent=11 // pred_region
          _
        $region32: #{tpu_custom_call.1} parent=11 // pred_fallthru
          _
        // Predicated region
        $region33: #{tpu_custom_call.1} parent=11 // pred_check
          %p285 = pneg %p172
        $region34: #{tpu_custom_call.1} parent=11 // pred_check_branch
          %287 = sbr.rel (%p285) target = $region36
        $region35: #{tpu_custom_call.1} parent=11 // pred_region
          _
        $region36: #{tpu_custom_call.1} parent=11 // pred_fallthru
          _
        // Predicated region
        $region37: #{tpu_custom_call.1} parent=11 // pred_check
          %p288 = pneg %p193
        $region38: #{tpu_custom_call.1} parent=11 // pred_check_branch
          %290 = sbr.rel (%p288) target = $region40
        $region39: #{tpu_custom_call.1} parent=11 // pred_region
          %292 = vsyncadd [#allocation11], 0
          %s294 = sshll.u32 %s7, 4
          %s295 = int_to_ptr.hbm [resolvable:$true] %s294
          %s296 = sshll.u32 [#allocation12], 4
          %s297 = int_to_ptr.vmem [resolvable:$true] %s296
          %299 = dma.hbm_to_vmem [thread:$0]  %s295, 256, %s297, [#allocation11]
        $region40: #{tpu_custom_call.1} parent=11 // pred_fallthru
          _
      $region12: #{tpu_custom_call.1} parent=5 // pred_fallthru
        _
      %p300 = scmp.lt.s32.totalorder %s20, 2
      // Predicated region
      $region41: #{tpu_custom_call.1} parent=5 // pred_check
        %p301 = pneg %p300
      $region42: #{tpu_custom_call.1} parent=5 // pred_check_branch
        %303 = sbr.rel (%p301) target = $region44
      $region43: #{tpu_custom_call.1} parent=5 // pred_region
        // Predicated region
        $region45: #{tpu_custom_call.1} parent=43 // pred_check
          %p304 = pneg %p40
        $region46: #{tpu_custom_call.1} parent=43 // pred_check_branch
          %306 = sbr.rel (%p304) target = $region48
        $region47: #{tpu_custom_call.1} parent=43 // pred_region
          %p307 = scmp.lt.s32.totalorder %s20, 1
          %s308 = scalar_select %p307, %s20, 1
          %s309 = smul.addr %s308, 2
          %s310 = smul.addr %s309, 4
          %s311 = scalar_lea.vmem %s0, %s310
        $region48: #{tpu_custom_call.1} parent=43 // pred_fallthru
          _
      $region44: #{tpu_custom_call.1} parent=5 // pred_fallthru
        _
      %p312 = scmp.le.s32.totalorder 1, %s20
      %p313 = scmp.lt.s32.totalorder %s20, 3
      %p314 = pnand %p312, %p313
      %p315 = pneg %p314
      // Predicated region
      $region49: #{tpu_custom_call.1} parent=5 // pred_check
        _
      $region50: #{tpu_custom_call.1} parent=5 // pred_check_branch
        %317 = sbr.rel (%p314) target = $region52
      $region51: #{tpu_custom_call.1} parent=5 // pred_region
        %s318 = ssub.s32 %s20, 1
        // Predicated region
        $region53: #{tpu_custom_call.1} parent=51 // pred_check
          %p319 = pneg %p67
        $region54: #{tpu_custom_call.1} parent=51 // pred_check_branch
          %321 = sbr.rel (%p319) target = $region56
        $region55: #{tpu_custom_call.1} parent=51 // pred_region
          %323 = dma.done [#allocation5], 128
        $region56: #{tpu_custom_call.1} parent=51 // pred_fallthru
          _
        // Predicated region
        $region57: #{tpu_custom_call.1} parent=51 // pred_check
          %p324 = pneg %p88
        $region58: #{tpu_custom_call.1} parent=51 // pred_check_branch
          %326 = sbr.rel (%p324) target = $region60
        $region59: #{tpu_custom_call.1} parent=51 // pred_region
          %328 = dma.done [#allocation8], 128
        $region60: #{tpu_custom_call.1} parent=51 // pred_fallthru
          _
        // Predicated region
        $region61: #{tpu_custom_call.1} parent=51 // pred_check
          %p329 = pneg %p109
        $region62: #{tpu_custom_call.1} parent=51 // pred_check_branch
          %331 = sbr.rel (%p329) target = $region64
        $region63: #{tpu_custom_call.1} parent=51 // pred_region
          %333 = dma.done [#allocation8], 128
        $region64: #{tpu_custom_call.1} parent=51 // pred_fallthru
          _
        // Predicated region
        $region65: #{tpu_custom_call.1} parent=51 // pred_check
          %p334 = pneg %p130
        $region66: #{tpu_custom_call.1} parent=51 // pred_check_branch
          %336 = sbr.rel (%p334) target = $region68
        $region67: #{tpu_custom_call.1} parent=51 // pred_region
          %338 = dma.done [#allocation11], 128
        $region68: #{tpu_custom_call.1} parent=51 // pred_fallthru
          _
        // Predicated region
        $region69: #{tpu_custom_call.1} parent=51 // pred_check
          %p339 = pneg %p193
        $region70: #{tpu_custom_call.1} parent=51 // pred_check_branch
          %341 = sbr.rel (%p339) target = $region72
        $region71: #{tpu_custom_call.1} parent=51 // pred_region
          %343 = dma.done [#allocation11], 256
        $region72: #{tpu_custom_call.1} parent=51 // pred_fallthru
          _
        %p344 = scmp.lt.s32.totalorder %s25, 1
        %s345 = scalar_select %p344, %s25, 1
        %s346 = smul.addr %s345, 2
        %s347 = smul.addr %s346, 4
        %s348 = scalar_lea.vmem %s0, %s347
        %p349 = pneg %p46
        %p350 = pneg %p43
        %p351 = pneg %p67
        %p352 = pneg %p64
        %p353 = pneg %p88
        %p354 = pneg %p85
        %p355 = pneg %p109
        %p356 = pneg %p106
        %p357 = pneg %p130
        %p358 = pneg %p127
        %p359 = pneg %p151
        %p360 = pneg %p148
        %p361 = pneg %p172
        %p362 = pneg %p169
        %p363 = pneg %p193
        %p364 = pneg %p190
        %p365 = pneg %p219
        %p366 = pneg %p216
        %s367 = sand.u32 %s206, 1
        %s368 = scalar_lea.sflag [#allocation6], %s367
        %s369 = sand.u32 %s206, 1
        %s370 = smul.addr %s369, 16
        %s371 = scalar_lea.vmem [#allocation13], %s370
        %p372 = scmp.lt.s32.totalorder %s25, 1
        %s373 = scalar_select %p372, %s25, 1
        %s374 = smul.addr %s373, 2
        %s375 = smul.addr %s374, 4
        %s376 = scalar_lea.vmem %s0, %s375
        %v377 = vld [vmem:[%s6] sm:$0x7f]
        %v378 = vld [vmem:[%s6 + $0x8] sm:$0x7f]
        %v379 = vld [vmem:[#allocation12] sm:$0x7f]
        %v380 = vld [vmem:[#allocation12 + $0x8] sm:$0x7f]
        %v381 = vld [vmem:[%s376] sm:$0xff]
        %383 = vst [vmem:[#allocation1] ss:$2 sm:$0xff] %v381
        %v384 = vld.sshfl [vmem:[#allocation1] sm:$0xff pattern:$0x75316420]
        %v385 = vld.sshfl [vmem:[#allocation1 + $0x8] sm:$0xff pattern:$0x75316420]
        %388 = vrot.lane.b32.xlu0 %v384, 48
        %v389 = vpop.permute.xlu0 %388
        %390 = vrot.lane.b32.xlu0 %v385, 48
        %v391 = vpop.permute.xlu0 %390
        %v392 = vlaneseq
        %v393 = vand.u32 %v392, 127
        %vm394 = vcmp.lt.s32.totalorder %v393, 48
        %v395 = vsel %vm394, %v389, %v391
        %v396 = vsel %vm394, %v391, %v389
        %v397 = vperm.slane %v377, 0
        %v398 = vperm.slane %v378, 0
        %v399 = vmul.f32 %v396, %v397
        %v400 = vmul.f32 %v395, %v398
        %401 = vst [vmem:[#allocation2] sm:$0xf] %v399
        %402 = vst [vmem:[#allocation2 + $0x8] sm:$0xf] %v400
        %403 = vst [vmem:[#allocation2] sm:$0xf0] 0.0
        %404 = vst [vmem:[#allocation2 + $0x8] sm:$0xf0] 0.0
        %405 = vst [vmem:[#allocation1] ss:$2 sm:$0xff] %v381
        %v406 = vld.sshfl [vmem:[#allocation1] sm:$0xff pattern:$0x75316420]
        %v407 = vld.sshfl [vmem:[#allocation1 + $0x8] sm:$0xff pattern:$0x75316420]
        %410 = vrot.lane.b32.xlu0 %v406, 32
        %v411 = vpop.permute.xlu0 %410
        %412 = vrot.lane.b32.xlu0 %v407, 32
        %v413 = vpop.permute.xlu0 %412
        %vm414 = vcmp.lt.s32.totalorder %v393, 32
        %v415 = vsel %vm414, %v411, %v413
        %v416 = vsel %vm414, %v413, %v411
        %v417 = vperm.slane %v377, 1
        %v418 = vperm.slane %v378, 1
        %v419 = vmul.f32 %v416, %v417
        %v420 = vmul.f32 %v415, %v418
        %421 = vst [vmem:[#allocation2 + $0x10] sm:$0xf] %v419
        %422 = vst [vmem:[#allocation2 + $0x18] sm:$0xf] %v420
        %423 = vst [vmem:[#allocation2 + $0x10] sm:$0xf0] 0.0
        %424 = vst [vmem:[#allocation2 + $0x18] sm:$0xf0] 0.0
        %425 = vst [vmem:[#allocation1] ss:$2 sm:$0xff] %v381
        %v426 = vld.sshfl [vmem:[#allocation1] sm:$0xff pattern:$0x75316420]
        %v427 = vld.sshfl [vmem:[#allocation1 + $0x8] sm:$0xff pattern:$0x75316420]
        %430 = vrot.lane.b32.xlu0 %v426, 16
        %v431 = vpop.permute.xlu0 %430
        %432 = vrot.lane.b32.xlu0 %v427, 16
        %v433 = vpop.permute.xlu0 %432
        %vm434 = vcmp.lt.s32.totalorder %v393, 16
        %v435 = vsel %vm434, %v431, %v433
        %v436 = vsel %vm434, %v433, %v431
        %v437 = vperm.slane %v377, 2
        %v438 = vperm.slane %v378, 2
        %v439 = vmul.f32 %v436, %v437
        %v440 = vmul.f32 %v435, %v438
        %441 = vst [vmem:[#allocation2 + $0x20] sm:$0xf] %v439
        %442 = vst [vmem:[#allocation2 + $0x28] sm:$0xf] %v440
        %443 = vst [vmem:[#allocation2 + $0x20] sm:$0xf0] 0.0
        %444 = vst [vmem:[#allocation2 + $0x28] sm:$0xf0] 0.0
        %445 = vst [vmem:[#allocation1] ss:$2 sm:$0xff] %v381
        %v446 = vld.sshfl [vmem:[#allocation1] sm:$0xff pattern:$0x75316420]
        %v447 = vld.sshfl [vmem:[#allocation1 + $0x8] sm:$0xff pattern:$0x75316420]
        %450 = vst [vmem:[#allocation2 + $0x30] sm:$0xf] %v446
        %451 = vst [vmem:[#allocation2 + $0x38] sm:$0xf] %v447
        %452 = vst [vmem:[#allocation2 + $0x30] sm:$0xf0] 0.0
        %453 = vst [vmem:[#allocation2 + $0x38] sm:$0xf0] 0.0
        %454 = vst [vmem:[#allocation1] ss:$2 sm:$0xff] %v381
        %v455 = vld.sshfl [vmem:[#allocation1] sm:$0xff pattern:$0x75316420]
        %v456 = vld.sshfl [vmem:[#allocation1 + $0x8] sm:$0xff pattern:$0x75316420]
        %459 = vrot.lane.b32.xlu0 %v455, 112
        %v460 = vpop.permute.xlu0 %459
        %461 = vrot.lane.b32.xlu0 %v456, 112
        %v462 = vpop.permute.xlu0 %461
        %vm463 = vcmp.lt.s32.totalorder %v393, 112
        %v464 = vsel %vm463, %v460, %v462
        %v465 = vsel %vm463, %v462, %v460
        %v466 = vperm.slane %v377, 4
        %v467 = vperm.slane %v378, 4
        %v468 = vmul.f32 %v464, %v466
        %v469 = vmul.f32 %v465, %v467
        %470 = vst [vmem:[#allocation2 + $0x40] sm:$0xf] %v468
        %471 = vst [vmem:[#allocation2 + $0x48] sm:$0xf] %v469
        %472 = vst [vmem:[#allocation2 + $0x40] sm:$0xf0] 0.0
        %473 = vst [vmem:[#allocation2 + $0x48] sm:$0xf0] 0.0
        %474 = vst [vmem:[#allocation1] ss:$2 sm:$0xff] %v381
        %v475 = vld.sshfl [vmem:[#allocation1] sm:$0xff pattern:$0x75316420]
        %v476 = vld.sshfl [vmem:[#allocation1 + $0x8] sm:$0xff pattern:$0x75316420]
        %479 = vrot.lane.b32.xlu0 %v475, 96
        %v480 = vpop.permute.xlu0 %479
        %481 = vrot.lane.b32.xlu0 %v476, 96
        %v482 = vpop.permute.xlu0 %481
        %vm483 = vcmp.lt.s32.totalorder %v393, 96
        %v484 = vsel %vm483, %v480, %v482
        %v485 = vsel %vm483, %v482, %v480
        %v486 = vperm.slane %v377, 5
        %v487 = vperm.slane %v378, 5
        %v488 = vmul.f32 %v484, %v486
        %v489 = vmul.f32 %v485, %v487
        %490 = vst [vmem:[#allocation2 + $0x50] sm:$0xf] %v488
        %491 = vst [vmem:[#allocation2 + $0x58] sm:$0xf] %v489
        %492 = vst [vmem:[#allocation2 + $0x50] sm:$0xf0] 0.0
        %493 = vst [vmem:[#allocation2 + $0x58] sm:$0xf0] 0.0
        %494 = vst [vmem:[#allocation1] ss:$2 sm:$0xff] %v381
        %v495 = vld.sshfl [vmem:[#allocation1] sm:$0xff pattern:$0x75316420]
        %v496 = vld.sshfl [vmem:[#allocation1 + $0x8] sm:$0xff pattern:$0x75316420]
        %499 = vrot.lane.b32.xlu0 %v495, 80
        %v500 = vpop.permute.xlu0 %499
        %501 = vrot.lane.b32.xlu0 %v496, 80
        %v502 = vpop.permute.xlu0 %501
        %vm503 = vcmp.lt.s32.totalorder %v393, 80
        %v504 = vsel %vm503, %v500, %v502
        %v505 = vsel %vm503, %v502, %v500
        %v506 = vperm.slane %v377, 6
        %v507 = vperm.slane %v378, 6
        %v508 = vmul.f32 %v504, %v506
        %v509 = vmul.f32 %v505, %v507
        %510 = vst [vmem:[#allocation2 + $0x60] sm:$0xf] %v508
        %511 = vst [vmem:[#allocation2 + $0x68] sm:$0xf] %v509
        %512 = vst [vmem:[#allocation2 + $0x60] sm:$0xf0] 0.0
        %513 = vst [vmem:[#allocation2 + $0x68] sm:$0xf0] 0.0
        %514 = vst [vmem:[#allocation1] ss:$2 sm:$0xff] %v381
        %v515 = vld.sshfl [vmem:[#allocation1] sm:$0xff pattern:$0x75316420]
        %v516 = vld.sshfl [vmem:[#allocation1 + $0x8] sm:$0xff pattern:$0x75316420]
        %519 = vrot.lane.b32.xlu0 %v515, 3
        %v520 = vpop.permute.xlu0 %519
        %521 = vrot.lane.b32.xlu0 %v516, 3
        %v522 = vpop.permute.xlu0 %521
        %vm523 = vcmp.lt.s32.totalorder %v393, 3
        %v524 = vsel %vm523, %v520, %v522
        %v525 = vsel %vm523, %v522, %v520
        %v526 = vperm.slane %v379, 0
        %v527 = vperm.slane %v380, 0
        %v528 = vmul.f32 %v525, %v526
        %v529 = vmul.f32 %v524, %v527
        %530 = vst [vmem:[#allocation3] sm:$0xf] %v528
        %531 = vst [vmem:[#allocation3 + $0x8] sm:$0xf] %v529
        %532 = vst [vmem:[#allocation3] sm:$0xf0] 0.0
        %533 = vst [vmem:[#allocation3 + $0x8] sm:$0xf0] 0.0
        %534 = vst [vmem:[#allocation1] ss:$2 sm:$0xff] %v381
        %v535 = vld.sshfl [vmem:[#allocation1] sm:$0xff pattern:$0x75316420]
        %v536 = vld.sshfl [vmem:[#allocation1 + $0x8] sm:$0xff pattern:$0x75316420]
        %539 = vrot.lane.b32.xlu0 %v535, 2
        %v540 = vpop.permute.xlu0 %539
        %541 = vrot.lane.b32.xlu0 %v536, 2
        %v542 = vpop.permute.xlu0 %541
        %vm543 = vcmp.lt.s32.totalorder %v393, 2
        %v544 = vsel %vm543, %v540, %v542
        %v545 = vsel %vm543, %v542, %v540
        %v546 = vperm.slane %v379, 1
        %v547 = vperm.slane %v380, 1
        %v548 = vmul.f32 %v545, %v546
        %v549 = vmul.f32 %v544, %v547
        %550 = vst [vmem:[#allocation3 + $0x10] sm:$0xf] %v548
        %551 = vst [vmem:[#allocation3 + $0x18] sm:$0xf] %v549
        %552 = vst [vmem:[#allocation3 + $0x10] sm:$0xf0] 0.0
        %553 = vst [vmem:[#allocation3 + $0x18] sm:$0xf0] 0.0
        %554 = vst [vmem:[#allocation1] ss:$2 sm:$0xff] %v381
        %v555 = vld.sshfl [vmem:[#allocation1] sm:$0xff pattern:$0x75316420]
        %v556 = vld.sshfl [vmem:[#allocation1 + $0x8] sm:$0xff pattern:$0x75316420]
        %559 = vrot.lane.b32.xlu0 %v555, 1
        %v560 = vpop.permute.xlu0 %559
        %561 = vrot.lane.b32.xlu0 %v556, 1
        %v562 = vpop.permute.xlu0 %561
        %vm563 = vcmp.lt.s32.totalorder %v393, 1
        %v564 = vsel %vm563, %v560, %v562
        %v565 = vsel %vm563, %v562, %v560
        %v566 = vperm.slane %v379, 2
        %v567 = vperm.slane %v380, 2
        %v568 = vmul.f32 %v565, %v566
        %v569 = vmul.f32 %v564, %v567
        %570 = vst [vmem:[#allocation3 + $0x20] sm:$0xf] %v568
        %571 = vst [vmem:[#allocation3 + $0x28] sm:$0xf] %v569
        %572 = vst [vmem:[#allocation3 + $0x20] sm:$0xf0] 0.0
        %573 = vst [vmem:[#allocation3 + $0x28] sm:$0xf0] 0.0
        %574 = vst [vmem:[#allocation1] ss:$2 sm:$0xff] %v381
        %v575 = vld.sshfl [vmem:[#allocation1] sm:$0xff pattern:$0x75316420]
        %v576 = vld.sshfl [vmem:[#allocation1 + $0x8] sm:$0xff pattern:$0x75316420]
        %579 = vst [vmem:[#allocation3 + $0x30] sm:$0xf] %v575
        %580 = vst [vmem:[#allocation3 + $0x38] sm:$0xf] %v576
        %581 = vst [vmem:[#allocation3 + $0x30] sm:$0xf0] 0.0
        %582 = vst [vmem:[#allocation3 + $0x38] sm:$0xf0] 0.0
        %583 = vst [vmem:[#allocation1] ss:$2 sm:$0xff] %v381
        %v584 = vld.sshfl [vmem:[#allocation1] sm:$0xff pattern:$0x75316420]
        %v585 = vld.sshfl [vmem:[#allocation1 + $0x8] sm:$0xff pattern:$0x75316420]
        %588 = vrot.lane.b32.xlu0 %v584, 127
        %v589 = vpop.permute.xlu0 %588
        %590 = vrot.lane.b32.xlu0 %v585, 127
        %v591 = vpop.permute.xlu0 %590
        %vm592 = vcmp.lt.s32.totalorder %v393, 127
        %v593 = vsel %vm592, %v589, %v591
        %v594 = vsel %vm592, %v591, %v589
        %v595 = vperm.slane %v379, 4
        %v596 = vperm.slane %v380, 4
        %v597 = vmul.f32 %v593, %v595
        %v598 = vmul.f32 %v594, %v596
        %599 = vst [vmem:[#allocation3 + $0x40] sm:$0xf] %v597
        %600 = vst [vmem:[#allocation3 + $0x48] sm:$0xf] %v598
        %601 = vst [vmem:[#allocation3 + $0x40] sm:$0xf0] 0.0
        %602 = vst [vmem:[#allocation3 + $0x48] sm:$0xf0] 0.0
        %603 = vst [vmem:[#allocation1] ss:$2 sm:$0xff] %v381
        %v604 = vld.sshfl [vmem:[#allocation1] sm:$0xff pattern:$0x75316420]
        %v605 = vld.sshfl [vmem:[#allocation1 + $0x8] sm:$0xff pattern:$0x75316420]
        %608 = vrot.lane.b32.xlu0 %v604, 126
        %v609 = vpop.permute.xlu0 %608
        %610 = vrot.lane.b32.xlu0 %v605, 126
        %v611 = vpop.permute.xlu0 %610
        %vm612 = vcmp.lt.s32.totalorder %v393, 126
        %v613 = vsel %vm612, %v609, %v611
        %v614 = vsel %vm612, %v611, %v609
        %v615 = vperm.slane %v379, 5
        %v616 = vperm.slane %v380, 5
        %v617 = vmul.f32 %v613, %v615
        %v618 = vmul.f32 %v614, %v616
        %619 = vst [vmem:[#allocation3 + $0x50] sm:$0xf] %v617
        %620 = vst [vmem:[#allocation3 + $0x58] sm:$0xf] %v618
        %621 = vst [vmem:[#allocation3 + $0x50] sm:$0xf0] 0.0
        %622 = vst [vmem:[#allocation3 + $0x58] sm:$0xf0] 0.0
        %623 = vst [vmem:[#allocation1] ss:$2 sm:$0xff] %v381
        %v624 = vld.sshfl [vmem:[#allocation1] sm:$0xff pattern:$0x75316420]
        %v625 = vld.sshfl [vmem:[#allocation1 + $0x8] sm:$0xff pattern:$0x75316420]
        %628 = vrot.lane.b32.xlu0 %v624, 125
        %v629 = vpop.permute.xlu0 %628
        %630 = vrot.lane.b32.xlu0 %v625, 125
        %v631 = vpop.permute.xlu0 %630
        %vm632 = vcmp.lt.s32.totalorder %v393, 125
        %v633 = vsel %vm632, %v629, %v631
        %v634 = vsel %vm632, %v631, %v629
        %v635 = vperm.slane %v379, 6
        %v636 = vperm.slane %v380, 6
        %v637 = vmul.f32 %v633, %v635
        %v638 = vmul.f32 %v634, %v636
        %639 = vst [vmem:[#allocation3 + $0x60] sm:$0xf] %v637
        %640 = vst [vmem:[#allocation3 + $0x68] sm:$0xf] %v638
        %641 = vst [vmem:[#allocation3 + $0x60] sm:$0xf0] 0.0
        %642 = vst [vmem:[#allocation3 + $0x68] sm:$0xf0] 0.0
        %v643 = vld [vmem:[#allocation4] sm:$0xff]
        %v644 = vld [vmem:[#allocation2] sm:$0xff]
        %v645 = vld [vmem:[#allocation2 + $0x8] sm:$0xff]
        %v646 = vld [vmem:[#allocation2 + $0x10] sm:$0xff]
        %v647 = vld [vmem:[#allocation2 + $0x18] sm:$0xff]
        %v648 = vld [vmem:[#allocation2 + $0x20] sm:$0xff]
        %v649 = vld [vmem:[#allocation2 + $0x28] sm:$0xff]
        %v650 = vld [vmem:[#allocation2 + $0x30] sm:$0xff]
        %v651 = vld [vmem:[#allocation2 + $0x38] sm:$0xff]
        %v652 = vld [vmem:[#allocation2 + $0x40] sm:$0xff]
        %v653 = vld [vmem:[#allocation2 + $0x48] sm:$0xff]
        %v654 = vld [vmem:[#allocation2 + $0x50] sm:$0xff]
        %v655 = vld [vmem:[#allocation2 + $0x58] sm:$0xff]
        %v656 = vld [vmem:[#allocation2 + $0x60] sm:$0xff]
        %v657 = vld [vmem:[#allocation2 + $0x68] sm:$0xff]
        %v658 = vld [vmem:[%s5] sm:$0xff]
        %660 = vset.pattern.permute.xlu0 0
        %661 = vperm.xlu0 %660, %v658
        %v662 = vpop.permute.xlu0 %661
        %vm664 = vcmask 457728
        %v666 = vsel %vm664, %v643, 0
        %668 = vmatpush.msra.mxu0 0.0
        %669 = vmatpush.msra.mxu0 0.0
        %670 = vmatpush.msra.mxu0 0.0
        %671 = vmatpush.msra.mxu0 0.0
        %672 = vmatpush.msra.mxu0 0.0
        %673 = vmatpush.msra.mxu0 0.0
        %674 = vmatpush.msra.mxu0 0.0
        %675 = vmatpush.msra.mxu0 0.0
        %676 = vmatpush.msra.mxu0 0.0
        %677 = vmatpush.msra.mxu0 %v656
        %678 = vmatpush.msra.mxu0 %v654
        %679 = vmatpush.msra.mxu0 %v652
        %680 = vmatpush.msra.mxu0 %v650
        %681 = vmatpush.msra.mxu0 %v648
        %682 = vmatpush.msra.mxu0 %v646
        %683 = vmatpush.msra.mxu0 %v644
        %684 = vmatmul.f32.gmra.mxu0 %v666
        %v685 = vpop.f32.mrf.mxu0
        %v686 = vadd.f32 %v662, %v685
        %687 = vdwg.mxu0
        %688 = vmatpush.msra.mxu0 0.0
        %689 = vmatpush.msra.mxu0 0.0
        %690 = vmatpush.msra.mxu0 0.0
        %691 = vmatpush.msra.mxu0 0.0
        %692 = vmatpush.msra.mxu0 0.0
        %693 = vmatpush.msra.mxu0 0.0
        %694 = vmatpush.msra.mxu0 0.0
        %695 = vmatpush.msra.mxu0 0.0
        %696 = vmatpush.msra.mxu0 0.0
        %697 = vmatpush.msra.mxu0 %v657
        %698 = vmatpush.msra.mxu0 %v655
        %699 = vmatpush.msra.mxu0 %v653
        %700 = vmatpush.msra.mxu0 %v651
        %701 = vmatpush.msra.mxu0 %v649
        %702 = vmatpush.msra.mxu0 %v647
        %703 = vmatpush.msra.mxu0 %v645
        %704 = vmatmul.f32.gmra.mxu0 %v666
        %v705 = vpop.f32.mrf.mxu0
        %v706 = vadd.f32 %v662, %v705
        %707 = vdwg.mxu0
        %v708 = vld [vmem:[#allocation9] sm:$0xff]
        %v709 = vld [vmem:[#allocation3] sm:$0xff]
        %v710 = vld [vmem:[#allocation3 + $0x8] sm:$0xff]
        %v711 = vld [vmem:[#allocation3 + $0x10] sm:$0xff]
        %v712 = vld [vmem:[#allocation3 + $0x18] sm:$0xff]
        %v713 = vld [vmem:[#allocation3 + $0x20] sm:$0xff]
        %v714 = vld [vmem:[#allocation3 + $0x28] sm:$0xff]
        %v715 = vld [vmem:[#allocation3 + $0x30] sm:$0xff]
        %v716 = vld [vmem:[#allocation3 + $0x38] sm:$0xff]
        %v717 = vld [vmem:[#allocation3 + $0x40] sm:$0xff]
        %v718 = vld [vmem:[#allocation3 + $0x48] sm:$0xff]
        %v719 = vld [vmem:[#allocation3 + $0x50] sm:$0xff]
        %v720 = vld [vmem:[#allocation3 + $0x58] sm:$0xff]
        %v721 = vld [vmem:[#allocation3 + $0x60] sm:$0xff]
        %v722 = vld [vmem:[#allocation3 + $0x68] sm:$0xff]
        %s723 = scalar_lea.vmem %s5, 16
        %v724 = vld [vmem:[%s723] sm:$0xff]
        %726 = vset.pattern.permute.xlu0 0
        %727 = vperm.xlu0 %726, %v724
        %v728 = vpop.permute.xlu0 %727
        %v731 = vsel %vm664, %v708, 0
        %733 = vmatpush.msra.mxu0 0.0
        %734 = vmatpush.msra.mxu0 0.0
        %735 = vmatpush.msra.mxu0 0.0
        %736 = vmatpush.msra.mxu0 0.0
        %737 = vmatpush.msra.mxu0 0.0
        %738 = vmatpush.msra.mxu0 0.0
        %739 = vmatpush.msra.mxu0 0.0
        %740 = vmatpush.msra.mxu0 0.0
        %741 = vmatpush.msra.mxu0 0.0
        %742 = vmatpush.msra.mxu0 %v721
        %743 = vmatpush.msra.mxu0 %v719
        %744 = vmatpush.msra.mxu0 %v717
        %745 = vmatpush.msra.mxu0 %v715
        %746 = vmatpush.msra.mxu0 %v713
        %747 = vmatpush.msra.mxu0 %v711
        %748 = vmatpush.msra.mxu0 %v709
        %749 = vmatmul.f32.gmra.mxu0 %v731
        %v750 = vpop.f32.mrf.mxu0
        %v751 = vadd.f32 %v728, %v750
        %752 = vdwg.mxu0
        %753 = vmatpush.msra.mxu0 0.0
        %754 = vmatpush.msra.mxu0 0.0
        %755 = vmatpush.msra.mxu0 0.0
        %756 = vmatpush.msra.mxu0 0.0
        %757 = vmatpush.msra.mxu0 0.0
        %758 = vmatpush.msra.mxu0 0.0
        %759 = vmatpush.msra.mxu0 0.0
        %760 = vmatpush.msra.mxu0 0.0
        %761 = vmatpush.msra.mxu0 0.0
        %762 = vmatpush.msra.mxu0 %v722
        %763 = vmatpush.msra.mxu0 %v720
        %764 = vmatpush.msra.mxu0 %v718
        %765 = vmatpush.msra.mxu0 %v716
        %766 = vmatpush.msra.mxu0 %v714
        %767 = vmatpush.msra.mxu0 %v712
        %768 = vmatpush.msra.mxu0 %v710
        %769 = vmatmul.f32.gmra.mxu0 %v731
        %v770 = vpop.f32.mrf.mxu0
        %v771 = vadd.f32 %v728, %v770
        %772 = vdwg.mxu0
        %773 = vrot.lane.b32.xlu0 %v686, 3
        %v774 = vpop.permute.xlu0 %773
        %775 = vrot.lane.b32.xlu0 %v706, 3
        %v776 = vpop.permute.xlu0 %775
        %v777 = vsel %vm523, %v774, %v776
        %v778 = vsel %vm523, %v776, %v774
        %v779 = vmul.f32 %v778, %v526
        %v780 = vmul.f32 %v777, %v527
        %781 = vst [vmem:[#allocation2] sm:$0xff] %v779
        %782 = vst [vmem:[#allocation2 + $0x8] sm:$0xff] %v780
        %783 = vrot.lane.b32.xlu0 %v686, 2
        %v784 = vpop.permute.xlu0 %783
        %785 = vrot.lane.b32.xlu0 %v706, 2
        %v786 = vpop.permute.xlu0 %785
        %v787 = vsel %vm543, %v784, %v786
        %v788 = vsel %vm543, %v786, %v784
        %v789 = vmul.f32 %v788, %v546
        %v790 = vmul.f32 %v787, %v547
        %791 = vst [vmem:[#allocation2 + $0x10] sm:$0xff] %v789
        %792 = vst [vmem:[#allocation2 + $0x18] sm:$0xff] %v790
        %793 = vrot.lane.b32.xlu0 %v686, 1
        %v794 = vpop.permute.xlu0 %793
        %795 = vrot.lane.b32.xlu0 %v706, 1
        %v796 = vpop.permute.xlu0 %795
        %v797 = vsel %vm563, %v794, %v796
        %v798 = vsel %vm563, %v796, %v794
        %v799 = vmul.f32 %v798, %v566
        %v800 = vmul.f32 %v797, %v567
        %801 = vst [vmem:[#allocation2 + $0x20] sm:$0xff] %v799
        %802 = vst [vmem:[#allocation2 + $0x28] sm:$0xff] %v800
        %803 = vst [vmem:[#allocation2 + $0x30] sm:$0xff] %v686
        %804 = vst [vmem:[#allocation2 + $0x38] sm:$0xff] %v706
        %805 = vrot.lane.b32.xlu0 %v686, 127
        %v806 = vpop.permute.xlu0 %805
        %807 = vrot.lane.b32.xlu0 %v706, 127
        %v808 = vpop.permute.xlu0 %807
        %v809 = vsel %vm592, %v806, %v808
        %v810 = vsel %vm592, %v808, %v806
        %v811 = vmul.f32 %v809, %v595
        %v812 = vmul.f32 %v810, %v596
        %813 = vst [vmem:[#allocation2 + $0x40] sm:$0xff] %v811
        %814 = vst [vmem:[#allocation2 + $0x48] sm:$0xff] %v812
        %815 = vrot.lane.b32.xlu0 %v686, 126
        %v816 = vpop.permute.xlu0 %815
        %817 = vrot.lane.b32.xlu0 %v706, 126
        %v818 = vpop.permute.xlu0 %817
        %v819 = vsel %vm612, %v816, %v818
        %v820 = vsel %vm612, %v818, %v816
        %v821 = vmul.f32 %v819, %v615
        %v822 = vmul.f32 %v820, %v616
        %823 = vst [vmem:[#allocation2 + $0x50] sm:$0xff] %v821
        %824 = vst [vmem:[#allocation2 + $0x58] sm:$0xff] %v822
        %825 = vrot.lane.b32.xlu0 %v686, 125
        %v826 = vpop.permute.xlu0 %825
        %827 = vrot.lane.b32.xlu0 %v706, 125
        %v828 = vpop.permute.xlu0 %827
        %v829 = vsel %vm632, %v826, %v828
        %v830 = vsel %vm632, %v828, %v826
        %v831 = vmul.f32 %v829, %v635
        %v832 = vmul.f32 %v830, %v636
        %833 = vst [vmem:[#allocation2 + $0x60] sm:$0xff] %v831
        %834 = vst [vmem:[#allocation2 + $0x68] sm:$0xff] %v832
        %835 = vrot.lane.b32.xlu0 %v751, 48
        %v836 = vpop.permute.xlu0 %835
        %837 = vrot.lane.b32.xlu0 %v771, 48
        %v838 = vpop.permute.xlu0 %837
        %v839 = vsel %vm394, %v836, %v838
        %v840 = vsel %vm394, %v838, %v836
        %v841 = vmul.f32 %v840, %v397
        %v842 = vmul.f32 %v839, %v398
        %843 = vst [vmem:[#allocation3] sm:$0xff] %v841
        %844 = vst [vmem:[#allocation3 + $0x8] sm:$0xff] %v842
        %845 = vrot.lane.b32.xlu0 %v751, 32
        %v846 = vpop.permute.xlu0 %845
        %847 = vrot.lane.b32.xlu0 %v771, 32
        %v848 = vpop.permute.xlu0 %847
        %v849 = vsel %vm414, %v846, %v848
        %v850 = vsel %vm414, %v848, %v846
        %v851 = vmul.f32 %v850, %v417
        %v852 = vmul.f32 %v849, %v418
        %853 = vst [vmem:[#allocation3 + $0x10] sm:$0xff] %v851
        %854 = vst [vmem:[#allocation3 + $0x18] sm:$0xff] %v852
        %855 = vrot.lane.b32.xlu0 %v751, 16
        %v856 = vpop.permute.xlu0 %855
        %857 = vrot.lane.b32.xlu0 %v771, 16
        %v858 = vpop.permute.xlu0 %857
        %v859 = vsel %vm434, %v856, %v858
        %v860 = vsel %vm434, %v858, %v856
        %v861 = vmul.f32 %v860, %v437
        %v862 = vmul.f32 %v859, %v438
        %863 = vst [vmem:[#allocation3 + $0x20] sm:$0xff] %v861
        %864 = vst [vmem:[#allocation3 + $0x28] sm:$0xff] %v862
        %865 = vst [vmem:[#allocation3 + $0x30] sm:$0xff] %v751
        %866 = vst [vmem:[#allocation3 + $0x38] sm:$0xff] %v771
        %867 = vrot.lane.b32.xlu0 %v751, 112
        %v868 = vpop.permute.xlu0 %867
        %869 = vrot.lane.b32.xlu0 %v771, 112
        %v870 = vpop.permute.xlu0 %869
        %v871 = vsel %vm463, %v868, %v870
        %v872 = vsel %vm463, %v870, %v868
        %v873 = vmul.f32 %v871, %v466
        %v874 = vmul.f32 %v872, %v467
        %875 = vst [vmem:[#allocation3 + $0x40] sm:$0xff] %v873
        %876 = vst [vmem:[#allocation3 + $0x48] sm:$0xff] %v874
        %877 = vrot.lane.b32.xlu0 %v751, 96
        %v878 = vpop.permute.xlu0 %877
        %879 = vrot.lane.b32.xlu0 %v771, 96
        %v880 = vpop.permute.xlu0 %879
        %v881 = vsel %vm483, %v878, %v880
        %v882 = vsel %vm483, %v880, %v878
        %v883 = vmul.f32 %v881, %v486
        %v884 = vmul.f32 %v882, %v487
        %885 = vst [vmem:[#allocation3 + $0x50] sm:$0xff] %v883
        %886 = vst [vmem:[#allocation3 + $0x58] sm:$0xff] %v884
        %887 = vrot.lane.b32.xlu0 %v751, 80
        %v888 = vpop.permute.xlu0 %887
        %889 = vrot.lane.b32.xlu0 %v771, 80
        %v890 = vpop.permute.xlu0 %889
        %v891 = vsel %vm503, %v888, %v890
        %v892 = vsel %vm503, %v890, %v888
        %v893 = vmul.f32 %v891, %v506
        %v894 = vmul.f32 %v892, %v507
        %895 = vst [vmem:[#allocation3 + $0x60] sm:$0xff] %v893
        %896 = vst [vmem:[#allocation3 + $0x68] sm:$0xff] %v894
        %v897 = vld [vmem:[#allocation7] sm:$0xff]
        %v898 = vld [vmem:[#allocation2] sm:$0xff]
        %v899 = vld [vmem:[#allocation2 + $0x8] sm:$0xff]
        %v900 = vld [vmem:[#allocation2 + $0x10] sm:$0xff]
        %v901 = vld [vmem:[#allocation2 + $0x18] sm:$0xff]
        %v902 = vld [vmem:[#allocation2 + $0x20] sm:$0xff]
        %v903 = vld [vmem:[#allocation2 + $0x28] sm:$0xff]
        %v904 = vld [vmem:[#allocation2 + $0x30] sm:$0xff]
        %v905 = vld [vmem:[#allocation2 + $0x38] sm:$0xff]
        %v906 = vld [vmem:[#allocation2 + $0x40] sm:$0xff]
        %v907 = vld [vmem:[#allocation2 + $0x48] sm:$0xff]
        %v908 = vld [vmem:[#allocation2 + $0x50] sm:$0xff]
        %v909 = vld [vmem:[#allocation2 + $0x58] sm:$0xff]
        %v910 = vld [vmem:[#allocation2 + $0x60] sm:$0xff]
        %v911 = vld [vmem:[#allocation2 + $0x68] sm:$0xff]
        %s912 = scalar_lea.vmem %s5, 8
        %v913 = vld [vmem:[%s912] sm:$0xff]
        %915 = vset.pattern.permute.xlu0 0
        %916 = vperm.xlu0 %915, %v913
        %v917 = vpop.permute.xlu0 %916
        %v920 = vsel %vm664, %v897, 0
        %922 = vmatpush.msra.mxu0 0.0
        %923 = vmatpush.msra.mxu0 0.0
        %924 = vmatpush.msra.mxu0 0.0
        %925 = vmatpush.msra.mxu0 0.0
        %926 = vmatpush.msra.mxu0 0.0
        %927 = vmatpush.msra.mxu0 0.0
        %928 = vmatpush.msra.mxu0 0.0
        %929 = vmatpush.msra.mxu0 0.0
        %930 = vmatpush.msra.mxu0 0.0
        %931 = vmatpush.msra.mxu0 %v910
        %932 = vmatpush.msra.mxu0 %v908
        %933 = vmatpush.msra.mxu0 %v906
        %934 = vmatpush.msra.mxu0 %v904
        %935 = vmatpush.msra.mxu0 %v902
        %936 = vmatpush.msra.mxu0 %v900
        %937 = vmatpush.msra.mxu0 %v898
        %938 = vmatmul.f32.gmra.mxu0 %v920
        %v939 = vpop.f32.mrf.mxu0
        %v940 = vadd.f32 %v917, %v939
        %941 = vdwg.mxu0
        %942 = vmatpush.msra.mxu0 0.0
        %943 = vmatpush.msra.mxu0 0.0
        %944 = vmatpush.msra.mxu0 0.0
        %945 = vmatpush.msra.mxu0 0.0
        %946 = vmatpush.msra.mxu0 0.0
        %947 = vmatpush.msra.mxu0 0.0
        %948 = vmatpush.msra.mxu0 0.0
        %949 = vmatpush.msra.mxu0 0.0
        %950 = vmatpush.msra.mxu0 0.0
        %951 = vmatpush.msra.mxu0 %v911
        %952 = vmatpush.msra.mxu0 %v909
        %953 = vmatpush.msra.mxu0 %v907
        %954 = vmatpush.msra.mxu0 %v905
        %955 = vmatpush.msra.mxu0 %v903
        %956 = vmatpush.msra.mxu0 %v901
        %957 = vmatpush.msra.mxu0 %v899
        %958 = vmatmul.f32.gmra.mxu0 %v920
        %v959 = vpop.f32.mrf.mxu0
        %v960 = vadd.f32 %v917, %v959
        %961 = vdwg.mxu0
        %v962 = vld [vmem:[#allocation10] sm:$0xff]
        %v963 = vld [vmem:[#allocation3] sm:$0xff]
        %v964 = vld [vmem:[#allocation3 + $0x8] sm:$0xff]
        %v965 = vld [vmem:[#allocation3 + $0x10] sm:$0xff]
        %v966 = vld [vmem:[#allocation3 + $0x18] sm:$0xff]
        %v967 = vld [vmem:[#allocation3 + $0x20] sm:$0xff]
        %v968 = vld [vmem:[#allocation3 + $0x28] sm:$0xff]
        %v969 = vld [vmem:[#allocation3 + $0x30] sm:$0xff]
        %v970 = vld [vmem:[#allocation3 + $0x38] sm:$0xff]
        %v971 = vld [vmem:[#allocation3 + $0x40] sm:$0xff]
        %v972 = vld [vmem:[#allocation3 + $0x48] sm:$0xff]
        %v973 = vld [vmem:[#allocation3 + $0x50] sm:$0xff]
        %v974 = vld [vmem:[#allocation3 + $0x58] sm:$0xff]
        %v975 = vld [vmem:[#allocation3 + $0x60] sm:$0xff]
        %v976 = vld [vmem:[#allocation3 + $0x68] sm:$0xff]
        %s977 = scalar_lea.vmem %s5, 24
        %v978 = vld [vmem:[%s977] sm:$0xff]
        %980 = vset.pattern.permute.xlu0 0
        %981 = vperm.xlu0 %980, %v978
        %v982 = vpop.permute.xlu0 %981
        %v985 = vsel %vm664, %v962, 0
        %987 = vmatpush.msra.mxu0 0.0
        %988 = vmatpush.msra.mxu0 0.0
        %989 = vmatpush.msra.mxu0 0.0
        %990 = vmatpush.msra.mxu0 0.0
        %991 = vmatpush.msra.mxu0 0.0
        %992 = vmatpush.msra.mxu0 0.0
        %993 = vmatpush.msra.mxu0 0.0
        %994 = vmatpush.msra.mxu0 0.0
        %995 = vmatpush.msra.mxu0 0.0
        %996 = vmatpush.msra.mxu0 %v975
        %997 = vmatpush.msra.mxu0 %v973
        %998 = vmatpush.msra.mxu0 %v971
        %999 = vmatpush.msra.mxu0 %v969
        %1000 = vmatpush.msra.mxu0 %v967
        %1001 = vmatpush.msra.mxu0 %v965
        %1002 = vmatpush.msra.mxu0 %v963
        %1003 = vmatmul.f32.gmra.mxu0 %v985
        %v1004 = vpop.f32.mrf.mxu0
        %v1005 = vadd.f32 %v982, %v1004
        %1006 = vdwg.mxu0
        %1007 = vmatpush.msra.mxu0 0.0
        %1008 = vmatpush.msra.mxu0 0.0
        %1009 = vmatpush.msra.mxu0 0.0
        %1010 = vmatpush.msra.mxu0 0.0
        %1011 = vmatpush.msra.mxu0 0.0
        %1012 = vmatpush.msra.mxu0 0.0
        %1013 = vmatpush.msra.mxu0 0.0
        %1014 = vmatpush.msra.mxu0 0.0
        %1015 = vmatpush.msra.mxu0 0.0
        %1016 = vmatpush.msra.mxu0 %v976
        %1017 = vmatpush.msra.mxu0 %v974
        %1018 = vmatpush.msra.mxu0 %v972
        %1019 = vmatpush.msra.mxu0 %v970
        %1020 = vmatpush.msra.mxu0 %v968
        %1021 = vmatpush.msra.mxu0 %v966
        %1022 = vmatpush.msra.mxu0 %v964
        %1023 = vmatmul.f32.gmra.mxu0 %v985
        %v1024 = vpop.f32.mrf.mxu0
        %v1025 = vadd.f32 %v982, %v1024
        %1026 = vdwg.mxu0
        %v1027 = vadd.f32 %v940, %v1005
        %v1028 = vadd.f32 %v960, %v1025
        %1029 = vst [vmem:[%s371] sm:$0xff] %v1027
        %1030 = vst [vmem:[%s371 + $0x8] sm:$0xff] %v1028
        %s1031 = sand.u32 %s206, 1
        %s1032 = scalar_lea.sflag [#allocation6], %s1031
        %s1033 = sand.u32 %s206, 1
        %s1034 = smul.addr %s1033, 16
        %s1035 = scalar_lea.vmem [#allocation13], %s1034
        // Predicated region
        $region73: #{tpu_custom_call.1} parent=51 // pred_check
          %p1036 = pneg %p216
        $region74: #{tpu_custom_call.1} parent=51 // pred_check_branch
          %1038 = sbr.rel (%p1036) target = $region76
        $region75: #{tpu_custom_call.1} parent=51 // pred_region
          %1040 = vsyncadd %s1032, 0
          %s1041 = smul.addr %s25, 2
          %s1042 = smul.addr %s1041, 8
          %s1043 = scalar_lea.hbm %s8, %s1042
          %s1045 = sshll.u32 %s1035, 4
          %s1046 = int_to_ptr.vmem [resolvable:$true] %s1045
          %s1047 = sshll.u32 %s1043, 4
          %s1048 = int_to_ptr.hbm [resolvable:$true] %s1047
          %1050 = dma.vmem_to_hbm [thread:$0]  %s1046, 256, %s1048, %s1032
        $region76: #{tpu_custom_call.1} parent=51 // pred_fallthru
          _
      $region52: #{tpu_custom_call.1} parent=5 // pred_fallthru
        _
      %p1051 = scmp.le.s32.totalorder 2, %s20
      // Predicated region
      $region77: #{tpu_custom_call.1} parent=5 // pred_check
        %p1052 = pneg %p1051
      $region78: #{tpu_custom_call.1} parent=5 // pred_check_branch
        %1054 = sbr.rel (%p1052) target = $region80
      $region79: #{tpu_custom_call.1} parent=5 // pred_region
        %s1055 = ssub.s32 %s20, 2
        // Predicated region
        $region81: #{tpu_custom_call.1} parent=79 // pred_check
          %p1056 = pneg %p222
        $region82: #{tpu_custom_call.1} parent=79 // pred_check_branch
          %1058 = sbr.rel (%p1056) target = $region84
        $region83: #{tpu_custom_call.1} parent=79 // pred_region
          %s1059 = sand.u32 %s207, 1
          %s1060 = scalar_lea.sflag [#allocation6], %s1059
          %s1061 = sand.u32 %s207, 1
          %s1062 = smul.addr %s1061, 16
          %s1063 = scalar_lea.vmem [#allocation13], %s1062
          %1065 = dma.done %s1060, 256
        $region84: #{tpu_custom_call.1} parent=79 // pred_fallthru
          _
      $region80: #{tpu_custom_call.1} parent=5 // pred_fallthru
        _
    $region6: #{tpu_custom_call.1} parent=1 // loop_footer
      %s24 = sadd.s32 1, %s20
    $region7: #{tpu_custom_call.1} parent=1 // loop_footer_branch
      %19 = sbr.rel target = $region3
    $region8: #{tpu_custom_call.1} parent=1 // loop_exit
      _
    %1066 = vsyncpa [#allocation5], 1
    %s1067 = scalar_lea.sflag [#allocation5], 1
    %1068 = vsyncpa %s1067, 1
    %1069 = vsyncpa [#allocation8], 1
    %1070 = vsyncpa [#allocation11], 1
    %1071 = vsyncpa [#allocation6], 1
    %s1072 = scalar_lea.sflag [#allocation6], 1
    %1073 = vsyncpa %s1072, 1

</llo_original>
